<compile_context>
chip_gen: v7x
topology: tpu7x:2x2x1
jax: 0.10.0
libtpu: 0.0.40
codegen_flags: <defaults>
</compile_context>

<pallas_src>
import functools
import math

import jax
import jax.numpy as jnp
import numpy as np
from jax import lax
from jax.experimental import pallas as pl
from jax.experimental.pallas import tpu as pltpu

# ---------------- "cfg" (deterministic, set in-script) ----------------
KERNEL_SIZE = 3          # cfg.train.crf_kernel_size (must be odd)
ZETA        = 2.0        # cfg.train.crf_zeta
NUM_ITER    = 5          # cfg.train.crf_num_iter
HIGH_THRES  = 0.9        # cfg.train.crf_value_high_thres
LOW_THRES   = 0.1        # cfg.train.crf_value_low_thres


def _round_up(x, m):
    return (x + m - 1) // m * m


def _shift(x, d, axis):
    """result[..., i, ...] = x[..., i + d, ...] along `axis` (wrap-around).

    Wrapped entries are garbage; their contribution is zeroed through the
    masked pairwise-kernel weights.  Uses the XLU rotate (pltpu.roll) instead
    of pad + misaligned-slice VMEM copies.
    """
    if d == 0:
        return x
    n = x.shape[axis]
    return pltpu.roll(x, (-d) % n, axis)


def _tap_planes(K):
    """Offset (dy, dx) -> scratch plane index for the K*K-1 non-center taps."""
    r = K // 2
    offs = [(dy, dx) for dy in range(-r, r + 1) for dx in range(-r, r + 1)
            if (dy, dx) != (0, 0)]
    return {o: i for i, o in enumerate(offs)}


def _meanfield_kernel(fm_ref, seg_ref, out_ref, kern_ref, *,
                      K, true_h, true_w, zeta, num_iter, low, high):
    # fm_ref  : (1, C, Hp, Lp)    feature block (any float dtype), Lp packs G images
    # seg_ref : (1, Hp, Lp)       initial soft mask
    # out_ref : (1, Hp, Lp)       refined binary mask (f32)
    # kern_ref: (K*K-1, Hp, Lp)   f32 scratch: masked pairwise kernel weights
    r = K // 2
    C = fm_ref.shape[1]
    Hp, Lp = fm_ref.shape[2], fm_ref.shape[3]
    inv_2z2 = 1.0 / (2.0 * zeta * zeta)
    plane = _tap_planes(K)

    # --- per-element true (row, col) coordinates + validity masks (once) -----
    row = lax.broadcasted_iota(jnp.int32, (Hp, Lp), 0)
    lane = lax.broadcasted_iota(jnp.int32, (Hp, Lp), 1)
    if true_w > 0 and (true_w & (true_w - 1)) == 0:   # power-of-two width
        col = lane & (true_w - 1)
    else:
        col = lane % true_w
    row_ok = {dy: jnp.logical_and(row + dy >= 0, row + dy < true_h)
              for dy in range(-r, r + 1)}
    col_ok = {dx: jnp.logical_and(col + dx >= 0, col + dx < true_w)
              for dx in range(-r, r + 1)}

    # --- masked pairwise kernel weights (symmetry: compute half the taps) ----
    # Unmasked weights satisfy w_{-D}(p) = w_{D}(p - D) since ||a-b||^2 is
    # symmetric.  The +10 the torch code adds to the features only affects the
    # zero-padded out-of-bounds taps, which are masked to zero here, so it
    # cancels and is omitted.
    fm = [fm_ref[0, c].astype(jnp.float32) for c in range(C)]
    for dy in range(0, r + 1):
        fm_dy = fm if dy == 0 else [_shift(p, dy, 0) for p in fm]
        dx_lo = 1 if dy == 0 else -r
        for dx in range(dx_lo, r + 1):
            dist2 = jnp.zeros((Hp, Lp), jnp.float32)
            for c in range(C):
                d = (fm_dy[c] if dx == 0 else _shift(fm_dy[c], dx, 1)) - fm[c]
                dist2 = dist2 + d * d
            w = jnp.exp(-dist2 * inv_2z2)
            kern_ref[plane[(dy, dx)]] = jnp.where(
                jnp.logical_and(row_ok[dy], col_ok[dx]), w, 0.0)
            # Mirrored tap (-dy, -dx): roll the UNMASKED plane, then apply the
            # mirrored tap's own boundary mask.
            w_m = _shift(_shift(w, -dy, 0), -dx, 1)
            kern_ref[plane[(-dy, -dx)]] = jnp.where(
                jnp.logical_and(row_ok[-dy], col_ok[-dx]), w_m, 0.0)

    # --- mean-field iterations, carried in logit space -----------------------
    # out1 = sigmoid(A0 - A1), A0 - A1 = sum_k kern_k * logit(seg_k);
    # clamp(sigmoid(z), low, high) then logit() == clamp(z, logit(low), logit(high)).
    # (The reference's 1e-6 normalizer epsilon is negligible given the clamp.)
    lo = math.log(low / (1.0 - low))
    hi = math.log(high / (1.0 - high))
    seg0 = jnp.clip(seg_ref[0].astype(jnp.float32), low, high)
    logit0 = jnp.log(seg0) - jnp.log(1.0 - seg0)

    def body(_, lg):
        z = lg                                    # center tap, unmasked weight 1
        for dy in range(-r, r + 1):
            lg_dy = lg if dy == 0 else _shift(lg, dy, 0)
            for dx in range(-r, r + 1):
                if dy == 0 and dx == 0:
                    continue
                lg_sh = lg_dy if dx == 0 else _shift(lg_dy, dx, 1)
                z = z + kern_ref[plane[(dy, dx)]] * lg_sh
        return jnp.clip(z, lo, hi)

    lg = lax.fori_loop(0, num_iter, body, logit0, unroll=True)

    # (seg > 0.5) <=> final logit > 0  (clip preserves the sign).
    out_ref[0] = (lg > 0.0).astype(out_ref.dtype)


# ------------------------- wrapper / tiling logic -------------------------
def _vmem_capacity_bytes():
    try:
        cap = int(pltpu.get_tpu_info().vmem_capacity_bytes)
        if cap > 0:
            return cap
    except Exception:
        pass
    kind = ""
    try:
        kind = jax.devices()[0].device_kind.lower()
    except Exception:
        pass
    if "v7" in kind:
        return 64 << 20
    if "v4" in kind or "v5" in kind or "v6" in kind:
        return 128 << 20
    return 32 << 20            # conservative fallback


def _block_bytes(C, K, Hp, Lp):
    # double-buffered fm/seg/out blocks + (K*K-1) kern planes + setup temporaries
    planes = 4 * C + (K * K - 1) + 16
    return Hp * Lp * 4 * planes


def _choose_group(B, C, H, W, K, budget_bytes):
    """Largest divisor of B (capped at B//2 so the grid keeps >=2 steps for
    megacore / pipelining) whose per-grid-step VMEM footprint fits the budget."""
    g_cap = max(1, B // 2)
    best = 1
    for g in range(1, g_cap + 1):
        if B % g:
            continue
        if _block_bytes(C, K, _round_up(H, 8), _round_up(g * W, 128)) <= budget_bytes:
            best = g
    return best


def meanfield_pallas(feature_map, seg, *, K=KERNEL_SIZE, zeta=ZETA,
                     num_iter=NUM_ITER, low=LOW_THRES, high=HIGH_THRES):
    # TODO(synk): optional `targets` argument of the PyTorch forward is not
    # implemented (targets=None path only).
    B, C, H, W = feature_map.shape
    assert seg.shape == (B, H, W)
    assert K % 2 == 1

    capacity = _vmem_capacity_bytes()
    budget = int(0.70 * capacity)

    if H % 8 == 0 and W % 128 == 0:
        # Tile-aligned already: no host-side pack/pad round trip; grid directly
        # over the batch with the original layout (one image per grid step).
        G, NG, Hp, Lp = 1, B, H, W
        fm_p, seg_p, packed = feature_map, seg, False
    else:
        # Pack G images into the lane axis per grid step (lane-dense layout)
        # and pad to native tile multiples: sublanes (H) -> x8, lanes -> x128.
        G = _choose_group(B, C, H, W, K, budget)
        NG = B // G
        Hp = _round_up(H, 8)
        Lp = _round_up(G * W, 128)
        fm_p = feature_map.reshape(NG, G, C, H, W).transpose(0, 2, 3, 1, 4)
        fm_p = fm_p.reshape(NG, C, H, G * W)
        fm_p = jnp.pad(fm_p, ((0, 0), (0, 0), (0, Hp - H), (0, Lp - G * W)))
        seg_p = seg.reshape(NG, G, H, W).transpose(0, 2, 1, 3).reshape(NG, H, G * W)
        seg_p = jnp.pad(seg_p, ((0, 0), (0, Hp - H), (0, Lp - G * W)))
        packed = True

    if _block_bytes(C, K, Hp, Lp) > budget:
        # TODO(synk): add an H-stripe (halo) grid axis so single images larger
        # than the per-step VMEM budget (notably on v7x's 64 MiB) still run.
        raise ValueError(
            f"MeanField block ({Hp}x{Lp}, C={C}) exceeds the VMEM budget "
            f"({budget} bytes); H-stripe tiling not implemented yet.")

    kernel = functools.partial(_meanfield_kernel, K=K, true_h=H, true_w=W,
                               zeta=zeta, num_iter=num_iter, low=low, high=high)
    out_p = pl.pallas_call(
        kernel,
        out_shape=jax.ShapeDtypeStruct((NG, Hp, Lp), jnp.float32),
        grid=(NG,),
        in_specs=[
            pl.BlockSpec((1, C, Hp, Lp), lambda g: (g, 0, 0, 0)),
            pl.BlockSpec((1, Hp, Lp), lambda g: (g, 0, 0)),
        ],
        out_specs=pl.BlockSpec((1, Hp, Lp), lambda g: (g, 0, 0)),
        scratch_shapes=[pltpu.VMEM((K * K - 1, Hp, Lp), jnp.float32)],
        compiler_params=pltpu.CompilerParams(
            dimension_semantics=("parallel",),
            vmem_limit_bytes=int(0.85 * capacity)),
    )(fm_p, seg_p)

    if not packed:
        return out_p
    out = out_p[:, :H, :G * W].reshape(NG, H, G, W).transpose(0, 2, 1, 3)
    return out.reshape(B, H, W)


# ---------------- pure-JAX reference (mirrors the torch code) ----------------
def meanfield_ref(feature_map, seg, *, K=KERNEL_SIZE, zeta=ZETA,
                  num_iter=NUM_ITER, low=LOW_THRES, high=HIGH_THRES):
    B, C, H, W = feature_map.shape
    r = K // 2
    fm = feature_map.astype(jnp.float32) + 10.0
    fmp = jnp.pad(fm, ((0, 0), (0, 0), (r, r), (r, r)))
    nbrs = jnp.stack([fmp[:, :, ky:ky + H, kx:kx + W]
                      for ky in range(K) for kx in range(K)], axis=2)
    kern = jnp.exp(-jnp.sum((nbrs - fm[:, :, None]) ** 2, axis=1)
                   / (2.0 * zeta * zeta))                 # (B, K*K, H, W)
    s = jnp.clip(seg.astype(jnp.float32), low, high)
    for _ in range(num_iter):
        x = jnp.stack([1.0 - s, s], axis=1)               # (B, 2, H, W)
        nlp = jnp.pad(-jnp.log(x), ((0, 0), (0, 0), (r, r), (r, r)))
        unl = jnp.stack([nlp[:, :, ky:ky + H, kx:kx + W]
                         for ky in range(K) for kx in range(K)], axis=2)
        aggre = jnp.exp(-jnp.sum(unl * kern[:, None], axis=2))
        out = aggre / (1e-6 + jnp.sum(aggre, axis=1, keepdims=True))
        out = jnp.clip(out, low, high)
        s = out[:, 1]
    return (s > 0.5).astype(jnp.float32)


if __name__ == "__main__":
    B, C, H, W = 2, 4, 16, 16
    key = jax.random.PRNGKey(0)
    k1, k2 = jax.random.split(key)
    feature_map = jax.random.normal(k1, (B, C, H, W), dtype=jnp.float32)
    seg = jax.random.uniform(k2, (B, H, W), dtype=jnp.float32)

    out = meanfield_pallas(feature_map, seg)
    out = jax.block_until_ready(out)

    ref = np.asarray(meanfield_ref(feature_map, seg))
    got = np.asarray(out)
    assert got.shape == (B, H, W) and got.dtype == np.float32
    assert np.all((got == 0.0) | (got == 1.0))
    # binary masks; tolerate (at most) a tiny fraction of boundary flips
    assert np.mean(got != ref) <= 0.01, "Pallas output mismatch vs reference"
    print("KERNEL_OK")
</pallas_src>

<mosaic_0001>
module attributes {stable_mosaic.version = 11 : i64} {
  func.func @_meanfield_kernel(%arg0: i32, %arg1: memref<1x4x16x128xf32, #tpu.memory_space<vmem>>, %arg2: memref<1x16x128xf32, #tpu.memory_space<vmem>>, %arg3: memref<1x16x128xf32, #tpu.memory_space<vmem>>, %arg4: memref<8x16x128xf32, #tpu.memory_space<vmem>>) attributes {dimension_semantics = [#tpu.dimension_semantics<parallel>], iteration_bounds = array<i64: 2>, scalar_prefetch = 0 : i64, scratch_operands = 1 : i64, tpu.core_type = #tpu.core_type<tc>, window_params = [{transform_indices = @transform_0, window_bounds = array<i64: 1, 4, 16, 128>}, {transform_indices = @transform_1, window_bounds = array<i64: 1, 16, 128>}, {transform_indices = @transform_2, window_bounds = array<i64: 1, 16, 128>}]} {
    %0 = tpu.iota {dimensions = array<i32: 0>} : vector<16x128xi32>
    %1 = tpu.iota {dimensions = array<i32: 1>} : vector<16x128xi32>
    %c15_i32 = arith.constant 15 : i32
    %2 = vector.broadcast %c15_i32 : i32 to vector<16x128xi32>
    %3 = arith.andi %1, %2 : vector<16x128xi32>
    %c-1_i32 = arith.constant -1 : i32
    %4 = vector.broadcast %c-1_i32 : i32 to vector<16x128xi32>
    %5 = arith.addi %0, %4 : vector<16x128xi32>
    %c0_i32 = arith.constant 0 : i32
    %6 = vector.broadcast %c0_i32 : i32 to vector<16x128xi32>
    %7 = arith.cmpi sge, %5, %6 : vector<16x128xi32>
    %c-1_i32_0 = arith.constant -1 : i32
    %8 = vector.broadcast %c-1_i32_0 : i32 to vector<16x128xi32>
    %9 = arith.addi %0, %8 : vector<16x128xi32>
    %c16_i32 = arith.constant 16 : i32
    %10 = vector.broadcast %c16_i32 : i32 to vector<16x128xi32>
    %11 = arith.cmpi slt, %9, %10 : vector<16x128xi32>
    %12 = arith.andi %7, %11 : vector<16x128xi1>
    %c0_i32_1 = arith.constant 0 : i32
    %13 = vector.broadcast %c0_i32_1 : i32 to vector<16x128xi32>
    %14 = arith.addi %0, %13 : vector<16x128xi32>
    %c0_i32_2 = arith.constant 0 : i32
    %15 = vector.broadcast %c0_i32_2 : i32 to vector<16x128xi32>
    %16 = arith.cmpi sge, %14, %15 : vector<16x128xi32>
    %c0_i32_3 = arith.constant 0 : i32
    %17 = vector.broadcast %c0_i32_3 : i32 to vector<16x128xi32>
    %18 = arith.addi %0, %17 : vector<16x128xi32>
    %c16_i32_4 = arith.constant 16 : i32
    %19 = vector.broadcast %c16_i32_4 : i32 to vector<16x128xi32>
    %20 = arith.cmpi slt, %18, %19 : vector<16x128xi32>
    %21 = arith.andi %16, %20 : vector<16x128xi1>
    %c1_i32 = arith.constant 1 : i32
    %22 = vector.broadcast %c1_i32 : i32 to vector<16x128xi32>
    %23 = arith.addi %0, %22 : vector<16x128xi32>
    %c0_i32_5 = arith.constant 0 : i32
    %24 = vector.broadcast %c0_i32_5 : i32 to vector<16x128xi32>
    %25 = arith.cmpi sge, %23, %24 : vector<16x128xi32>
    %c1_i32_6 = arith.constant 1 : i32
    %26 = vector.broadcast %c1_i32_6 : i32 to vector<16x128xi32>
    %27 = arith.addi %0, %26 : vector<16x128xi32>
    %c16_i32_7 = arith.constant 16 : i32
    %28 = vector.broadcast %c16_i32_7 : i32 to vector<16x128xi32>
    %29 = arith.cmpi slt, %27, %28 : vector<16x128xi32>
    %30 = arith.andi %25, %29 : vector<16x128xi1>
    %c-1_i32_8 = arith.constant -1 : i32
    %31 = vector.broadcast %c-1_i32_8 : i32 to vector<16x128xi32>
    %32 = arith.addi %3, %31 : vector<16x128xi32>
    %c0_i32_9 = arith.constant 0 : i32
    %33 = vector.broadcast %c0_i32_9 : i32 to vector<16x128xi32>
    %34 = arith.cmpi sge, %32, %33 : vector<16x128xi32>
    %c-1_i32_10 = arith.constant -1 : i32
    %35 = vector.broadcast %c-1_i32_10 : i32 to vector<16x128xi32>
    %36 = arith.addi %3, %35 : vector<16x128xi32>
    %c16_i32_11 = arith.constant 16 : i32
    %37 = vector.broadcast %c16_i32_11 : i32 to vector<16x128xi32>
    %38 = arith.cmpi slt, %36, %37 : vector<16x128xi32>
    %39 = arith.andi %34, %38 : vector<16x128xi1>
    %c0_i32_12 = arith.constant 0 : i32
    %40 = vector.broadcast %c0_i32_12 : i32 to vector<16x128xi32>
    %41 = arith.addi %3, %40 : vector<16x128xi32>
    %c0_i32_13 = arith.constant 0 : i32
    %42 = vector.broadcast %c0_i32_13 : i32 to vector<16x128xi32>
    %43 = arith.cmpi sge, %41, %42 : vector<16x128xi32>
    %c0_i32_14 = arith.constant 0 : i32
    %44 = vector.broadcast %c0_i32_14 : i32 to vector<16x128xi32>
    %45 = arith.addi %3, %44 : vector<16x128xi32>
    %c16_i32_15 = arith.constant 16 : i32
    %46 = vector.broadcast %c16_i32_15 : i32 to vector<16x128xi32>
    %47 = arith.cmpi slt, %45, %46 : vector<16x128xi32>
    %48 = arith.andi %43, %47 : vector<16x128xi1>
    %c1_i32_16 = arith.constant 1 : i32
    %49 = vector.broadcast %c1_i32_16 : i32 to vector<16x128xi32>
    %50 = arith.addi %3, %49 : vector<16x128xi32>
    %c0_i32_17 = arith.constant 0 : i32
    %51 = vector.broadcast %c0_i32_17 : i32 to vector<16x128xi32>
    %52 = arith.cmpi sge, %50, %51 : vector<16x128xi32>
    %c1_i32_18 = arith.constant 1 : i32
    %53 = vector.broadcast %c1_i32_18 : i32 to vector<16x128xi32>
    %54 = arith.addi %3, %53 : vector<16x128xi32>
    %c16_i32_19 = arith.constant 16 : i32
    %55 = vector.broadcast %c16_i32_19 : i32 to vector<16x128xi32>
    %56 = arith.cmpi slt, %54, %55 : vector<16x128xi32>
    %57 = arith.andi %52, %56 : vector<16x128xi1>
    %c0 = arith.constant 0 : index
    %c0_20 = arith.constant 0 : index
    %c0_21 = arith.constant 0 : index
    %c0_22 = arith.constant 0 : index
    %58 = vector.load %arg1[%c0, %c0_20, %c0_21, %c0_22] : memref<1x4x16x128xf32, #tpu.memory_space<vmem>>, vector<1x1x16x128xf32>
    %59 = vector.shape_cast %58 : vector<1x1x16x128xf32> to vector<16x128xf32>
    %c0_23 = arith.constant 0 : index
    %c1 = arith.constant 1 : index
    %c0_24 = arith.constant 0 : index
    %c0_25 = arith.constant 0 : index
    %60 = vector.load %arg1[%c0_23, %c1, %c0_24, %c0_25] : memref<1x4x16x128xf32, #tpu.memory_space<vmem>>, vector<1x1x16x128xf32>
    %61 = vector.shape_cast %60 : vector<1x1x16x128xf32> to vector<16x128xf32>
    %c0_26 = arith.constant 0 : index
    %c2 = arith.constant 2 : index
    %c0_27 = arith.constant 0 : index
    %c0_28 = arith.constant 0 : index
    %62 = vector.load %arg1[%c0_26, %c2, %c0_27, %c0_28] : memref<1x4x16x128xf32, #tpu.memory_space<vmem>>, vector<1x1x16x128xf32>
    %63 = vector.shape_cast %62 : vector<1x1x16x128xf32> to vector<16x128xf32>
    %c0_29 = arith.constant 0 : index
    %c3 = arith.constant 3 : index
    %c0_30 = arith.constant 0 : index
    %c0_31 = arith.constant 0 : index
    %64 = vector.load %arg1[%c0_29, %c3, %c0_30, %c0_31] : memref<1x4x16x128xf32, #tpu.memory_space<vmem>>, vector<1x1x16x128xf32>
    %65 = vector.shape_cast %64 : vector<1x1x16x128xf32> to vector<16x128xf32>
    %cst = arith.constant 0.000000e+00 : f32
    %66 = vector.broadcast %cst : f32 to vector<16x128xf32>
    %c127_i32 = arith.constant 127 : i32
    %67 = tpu.dynamic_rotate %59 by %c127_i32 dim 1 : vector<16x128xf32>, i32 -> vector<16x128xf32>
    %68 = arith.subf %67, %59 : vector<16x128xf32>
    %69 = arith.mulf %68, %68 : vector<16x128xf32>
    %70 = arith.addf %66, %69 : vector<16x128xf32>
    %c127_i32_32 = arith.constant 127 : i32
    %71 = tpu.dynamic_rotate %61 by %c127_i32_32 dim 1 : vector<16x128xf32>, i32 -> vector<16x128xf32>
    %72 = arith.subf %71, %61 : vector<16x128xf32>
    %73 = arith.mulf %72, %72 : vector<16x128xf32>
    %74 = arith.addf %70, %73 : vector<16x128xf32>
    %c127_i32_33 = arith.constant 127 : i32
    %75 = tpu.dynamic_rotate %63 by %c127_i32_33 dim 1 : vector<16x128xf32>, i32 -> vector<16x128xf32>
    %76 = arith.subf %75, %63 : vector<16x128xf32>
    %77 = arith.mulf %76, %76 : vector<16x128xf32>
    %78 = arith.addf %74, %77 : vector<16x128xf32>
    %c127_i32_34 = arith.constant 127 : i32
    %79 = tpu.dynamic_rotate %65 by %c127_i32_34 dim 1 : vector<16x128xf32>, i32 -> vector<16x128xf32>
    %80 = arith.subf %79, %65 : vector<16x128xf32>
    %81 = arith.mulf %80, %80 : vector<16x128xf32>
    %82 = arith.addf %78, %81 : vector<16x128xf32>
    %cst_35 = arith.constant 0.000000e+00 : f32
    %83 = vector.broadcast %cst_35 : f32 to vector<16x128xf32>
    %84 = arith.subf %83, %82 : vector<16x128xf32>
    %cst_36 = arith.constant 1.250000e-01 : f32
    %85 = vector.broadcast %cst_36 : f32 to vector<16x128xf32>
    %86 = arith.mulf %84, %85 : vector<16x128xf32>
    %87 = math.exp %86 : vector<16x128xf32>
    %88 = arith.andi %21, %57 : vector<16x128xi1>
    %cst_37 = arith.constant 0.000000e+00 : f32
    %89 = vector.broadcast %cst_37 : f32 to vector<16x128xf32>
    %90 = arith.select %88, %87, %89 : vector<16x128xi1>, vector<16x128xf32>
    %c4 = arith.constant 4 : index
    %c0_38 = arith.constant 0 : index
    %c0_39 = arith.constant 0 : index
    %91 = vector.load %arg4[%c4, %c0_38, %c0_39] : memref<8x16x128xf32, #tpu.memory_space<vmem>>, vector<1x16x128xf32>
    %92 = vector.shape_cast %91 : vector<1x16x128xf32> to vector<16x128xf32>
    %93 = vector.shape_cast %90 : vector<16x128xf32> to vector<1x16x128xf32>
    tpu.vector_store %arg4[%c4, %c0_38, %c0_39], %93 {strides = array<i32>} : memref<8x16x128xf32, #tpu.memory_space<vmem>>, vector<1x16x128xf32>,
    %c1_i32_40 = arith.constant 1 : i32
    %94 = tpu.dynamic_rotate %87 by %c1_i32_40 dim 1 : vector<16x128xf32>, i32 -> vector<16x128xf32>
    %95 = arith.andi %21, %39 : vector<16x128xi1>
    %cst_41 = arith.constant 0.000000e+00 : f32
    %96 = vector.broadcast %cst_41 : f32 to vector<16x128xf32>
    %97 = arith.select %95, %94, %96 : vector<16x128xi1>, vector<16x128xf32>
    %c3_42 = arith.constant 3 : index
    %c0_43 = arith.constant 0 : index
    %c0_44 = arith.constant 0 : index
    %98 = vector.load %arg4[%c3_42, %c0_43, %c0_44] : memref<8x16x128xf32, #tpu.memory_space<vmem>>, vector<1x16x128xf32>
    %99 = vector.shape_cast %98 : vector<1x16x128xf32> to vector<16x128xf32>
    %100 = vector.shape_cast %97 : vector<16x128xf32> to vector<1x16x128xf32>
    tpu.vector_store %arg4[%c3_42, %c0_43, %c0_44], %100 {strides = array<i32>} : memref<8x16x128xf32, #tpu.memory_space<vmem>>, vector<1x16x128xf32>,
    %c15_i32_45 = arith.constant 15 : i32
    %101 = tpu.dynamic_rotate %59 by %c15_i32_45 dim 0 : vector<16x128xf32>, i32 -> vector<16x128xf32>
    %c15_i32_46 = arith.constant 15 : i32
    %102 = tpu.dynamic_rotate %61 by %c15_i32_46 dim 0 : vector<16x128xf32>, i32 -> vector<16x128xf32>
    %c15_i32_47 = arith.constant 15 : i32
    %103 = tpu.dynamic_rotate %63 by %c15_i32_47 dim 0 : vector<16x128xf32>, i32 -> vector<16x128xf32>
    %c15_i32_48 = arith.constant 15 : i32
    %104 = tpu.dynamic_rotate %65 by %c15_i32_48 dim 0 : vector<16x128xf32>, i32 -> vector<16x128xf32>
    %cst_49 = arith.constant 0.000000e+00 : f32
    %105 = vector.broadcast %cst_49 : f32 to vector<16x128xf32>
    %c1_i32_50 = arith.constant 1 : i32
    %106 = tpu.dynamic_rotate %101 by %c1_i32_50 dim 1 : vector<16x128xf32>, i32 -> vector<16x128xf32>
    %107 = arith.subf %106, %59 : vector<16x128xf32>
    %108 = arith.mulf %107, %107 : vector<16x128xf32>
    %109 = arith.addf %105, %108 : vector<16x128xf32>
    %c1_i32_51 = arith.constant 1 : i32
    %110 = tpu.dynamic_rotate %102 by %c1_i32_51 dim 1 : vector<16x128xf32>, i32 -> vector<16x128xf32>
    %111 = arith.subf %110, %61 : vector<16x128xf32>
    %112 = arith.mulf %111, %111 : vector<16x128xf32>
    %113 = arith.addf %109, %112 : vector<16x128xf32>
    %c1_i32_52 = arith.constant 1 : i32
    %114 = tpu.dynamic_rotate %103 by %c1_i32_52 dim 1 : vector<16x128xf32>, i32 -> vector<16x128xf32>
    %115 = arith.subf %114, %63 : vector<16x128xf32>
    %116 = arith.mulf %115, %115 : vector<16x128xf32>
    %117 = arith.addf %113, %116 : vector<16x128xf32>
    %c1_i32_53 = arith.constant 1 : i32
    %118 = tpu.dynamic_rotate %104 by %c1_i32_53 dim 1 : vector<16x128xf32>, i32 -> vector<16x128xf32>
    %119 = arith.subf %118, %65 : vector<16x128xf32>
    %120 = arith.mulf %119, %119 : vector<16x128xf32>
    %121 = arith.addf %117, %120 : vector<16x128xf32>
    %cst_54 = arith.constant 0.000000e+00 : f32
    %122 = vector.broadcast %cst_54 : f32 to vector<16x128xf32>
    %123 = arith.subf %122, %121 : vector<16x128xf32>
    %cst_55 = arith.constant 1.250000e-01 : f32
    %124 = vector.broadcast %cst_55 : f32 to vector<16x128xf32>
    %125 = arith.mulf %123, %124 : vector<16x128xf32>
    %126 = math.exp %125 : vector<16x128xf32>
    %127 = arith.andi %30, %39 : vector<16x128xi1>
    %cst_56 = arith.constant 0.000000e+00 : f32
    %128 = vector.broadcast %cst_56 : f32 to vector<16x128xf32>
    %129 = arith.select %127, %126, %128 : vector<16x128xi1>, vector<16x128xf32>
    %c5 = arith.constant 5 : index
    %c0_57 = arith.constant 0 : index
    %c0_58 = arith.constant 0 : index
    %130 = vector.load %arg4[%c5, %c0_57, %c0_58] : memref<8x16x128xf32, #tpu.memory_space<vmem>>, vector<1x16x128xf32>
    %131 = vector.shape_cast %130 : vector<1x16x128xf32> to vector<16x128xf32>
    %132 = vector.shape_cast %129 : vector<16x128xf32> to vector<1x16x128xf32>
    tpu.vector_store %arg4[%c5, %c0_57, %c0_58], %132 {strides = array<i32>} : memref<8x16x128xf32, #tpu.memory_space<vmem>>, vector<1x16x128xf32>,
    %c1_i32_59 = arith.constant 1 : i32
    %133 = tpu.dynamic_rotate %126 by %c1_i32_59 dim 0 : vector<16x128xf32>, i32 -> vector<16x128xf32>
    %c127_i32_60 = arith.constant 127 : i32
    %134 = tpu.dynamic_rotate %133 by %c127_i32_60 dim 1 : vector<16x128xf32>, i32 -> vector<16x128xf32>
    %135 = arith.andi %12, %57 : vector<16x128xi1>
    %cst_61 = arith.constant 0.000000e+00 : f32
    %136 = vector.broadcast %cst_61 : f32 to vector<16x128xf32>
    %137 = arith.select %135, %134, %136 : vector<16x128xi1>, vector<16x128xf32>
    %c2_62 = arith.constant 2 : index
    %c0_63 = arith.constant 0 : index
    %c0_64 = arith.constant 0 : index
    %138 = vector.load %arg4[%c2_62, %c0_63, %c0_64] : memref<8x16x128xf32, #tpu.memory_space<vmem>>, vector<1x16x128xf32>
    %139 = vector.shape_cast %138 : vector<1x16x128xf32> to vector<16x128xf32>
    %140 = vector.shape_cast %137 : vector<16x128xf32> to vector<1x16x128xf32>
    tpu.vector_store %arg4[%c2_62, %c0_63, %c0_64], %140 {strides = array<i32>} : memref<8x16x128xf32, #tpu.memory_space<vmem>>, vector<1x16x128xf32>,
    %cst_65 = arith.constant 0.000000e+00 : f32
    %141 = vector.broadcast %cst_65 : f32 to vector<16x128xf32>
    %142 = arith.subf %101, %59 : vector<16x128xf32>
    %143 = arith.mulf %142, %142 : vector<16x128xf32>
    %144 = arith.addf %141, %143 : vector<16x128xf32>
    %145 = arith.subf %102, %61 : vector<16x128xf32>
    %146 = arith.mulf %145, %145 : vector<16x128xf32>
    %147 = arith.addf %144, %146 : vector<16x128xf32>
    %148 = arith.subf %103, %63 : vector<16x128xf32>
    %149 = arith.mulf %148, %148 : vector<16x128xf32>
    %150 = arith.addf %147, %149 : vector<16x128xf32>
    %151 = arith.subf %104, %65 : vector<16x128xf32>
    %152 = arith.mulf %151, %151 : vector<16x128xf32>
    %153 = arith.addf %150, %152 : vector<16x128xf32>
    %cst_66 = arith.constant 0.000000e+00 : f32
    %154 = vector.broadcast %cst_66 : f32 to vector<16x128xf32>
    %155 = arith.subf %154, %153 : vector<16x128xf32>
    %cst_67 = arith.constant 1.250000e-01 : f32
    %156 = vector.broadcast %cst_67 : f32 to vector<16x128xf32>
    %157 = arith.mulf %155, %156 : vector<16x128xf32>
    %158 = math.exp %157 : vector<16x128xf32>
    %159 = arith.andi %30, %48 : vector<16x128xi1>
    %cst_68 = arith.constant 0.000000e+00 : f32
    %160 = vector.broadcast %cst_68 : f32 to vector<16x128xf32>
    %161 = arith.select %159, %158, %160 : vector<16x128xi1>, vector<16x128xf32>
    %c6 = arith.constant 6 : index
    %c0_69 = arith.constant 0 : index
    %c0_70 = arith.constant 0 : index
    %162 = vector.load %arg4[%c6, %c0_69, %c0_70] : memref<8x16x128xf32, #tpu.memory_space<vmem>>, vector<1x16x128xf32>
    %163 = vector.shape_cast %162 : vector<1x16x128xf32> to vector<16x128xf32>
    %164 = vector.shape_cast %161 : vector<16x128xf32> to vector<1x16x128xf32>
    tpu.vector_store %arg4[%c6, %c0_69, %c0_70], %164 {strides = array<i32>} : memref<8x16x128xf32, #tpu.memory_space<vmem>>, vector<1x16x128xf32>,
    %c1_i32_71 = arith.constant 1 : i32
    %165 = tpu.dynamic_rotate %158 by %c1_i32_71 dim 0 : vector<16x128xf32>, i32 -> vector<16x128xf32>
    %166 = arith.andi %12, %48 : vector<16x128xi1>
    %cst_72 = arith.constant 0.000000e+00 : f32
    %167 = vector.broadcast %cst_72 : f32 to vector<16x128xf32>
    %168 = arith.select %166, %165, %167 : vector<16x128xi1>, vector<16x128xf32>
    %c1_73 = arith.constant 1 : index
    %c0_74 = arith.constant 0 : index
    %c0_75 = arith.constant 0 : index
    %169 = vector.load %arg4[%c1_73, %c0_74, %c0_75] : memref<8x16x128xf32, #tpu.memory_space<vmem>>, vector<1x16x128xf32>
    %170 = vector.shape_cast %169 : vector<1x16x128xf32> to vector<16x128xf32>
    %171 = vector.shape_cast %168 : vector<16x128xf32> to vector<1x16x128xf32>
    tpu.vector_store %arg4[%c1_73, %c0_74, %c0_75], %171 {strides = array<i32>} : memref<8x16x128xf32, #tpu.memory_space<vmem>>, vector<1x16x128xf32>,
    %cst_76 = arith.constant 0.000000e+00 : f32
    %172 = vector.broadcast %cst_76 : f32 to vector<16x128xf32>
    %c127_i32_77 = arith.constant 127 : i32
    %173 = tpu.dynamic_rotate %101 by %c127_i32_77 dim 1 : vector<16x128xf32>, i32 -> vector<16x128xf32>
    %174 = arith.subf %173, %59 : vector<16x128xf32>
    %175 = arith.mulf %174, %174 : vector<16x128xf32>
    %176 = arith.addf %172, %175 : vector<16x128xf32>
    %c127_i32_78 = arith.constant 127 : i32
    %177 = tpu.dynamic_rotate %102 by %c127_i32_78 dim 1 : vector<16x128xf32>, i32 -> vector<16x128xf32>
    %178 = arith.subf %177, %61 : vector<16x128xf32>
    %179 = arith.mulf %178, %178 : vector<16x128xf32>
    %180 = arith.addf %176, %179 : vector<16x128xf32>
    %c127_i32_79 = arith.constant 127 : i32
    %181 = tpu.dynamic_rotate %103 by %c127_i32_79 dim 1 : vector<16x128xf32>, i32 -> vector<16x128xf32>
    %182 = arith.subf %181, %63 : vector<16x128xf32>
    %183 = arith.mulf %182, %182 : vector<16x128xf32>
    %184 = arith.addf %180, %183 : vector<16x128xf32>
    %c127_i32_80 = arith.constant 127 : i32
    %185 = tpu.dynamic_rotate %104 by %c127_i32_80 dim 1 : vector<16x128xf32>, i32 -> vector<16x128xf32>
    %186 = arith.subf %185, %65 : vector<16x128xf32>
    %187 = arith.mulf %186, %186 : vector<16x128xf32>
    %188 = arith.addf %184, %187 : vector<16x128xf32>
    %cst_81 = arith.constant 0.000000e+00 : f32
    %189 = vector.broadcast %cst_81 : f32 to vector<16x128xf32>
    %190 = arith.subf %189, %188 : vector<16x128xf32>
    %cst_82 = arith.constant 1.250000e-01 : f32
    %191 = vector.broadcast %cst_82 : f32 to vector<16x128xf32>
    %192 = arith.mulf %190, %191 : vector<16x128xf32>
    %193 = math.exp %192 : vector<16x128xf32>
    %194 = arith.andi %30, %57 : vector<16x128xi1>
    %cst_83 = arith.constant 0.000000e+00 : f32
    %195 = vector.broadcast %cst_83 : f32 to vector<16x128xf32>
    %196 = arith.select %194, %193, %195 : vector<16x128xi1>, vector<16x128xf32>
    %c7 = arith.constant 7 : index
    %c0_84 = arith.constant 0 : index
    %c0_85 = arith.constant 0 : index
    %197 = vector.load %arg4[%c7, %c0_84, %c0_85] : memref<8x16x128xf32, #tpu.memory_space<vmem>>, vector<1x16x128xf32>
    %198 = vector.shape_cast %197 : vector<1x16x128xf32> to vector<16x128xf32>
    %199 = vector.shape_cast %196 : vector<16x128xf32> to vector<1x16x128xf32>
    tpu.vector_store %arg4[%c7, %c0_84, %c0_85], %199 {strides = array<i32>} : memref<8x16x128xf32, #tpu.memory_space<vmem>>, vector<1x16x128xf32>,
    %c1_i32_86 = arith.constant 1 : i32
    %200 = tpu.dynamic_rotate %193 by %c1_i32_86 dim 0 : vector<16x128xf32>, i32 -> vector<16x128xf32>
    %c1_i32_87 = arith.constant 1 : i32
    %201 = tpu.dynamic_rotate %200 by %c1_i32_87 dim 1 : vector<16x128xf32>, i32 -> vector<16x128xf32>
    %202 = arith.andi %12, %39 : vector<16x128xi1>
    %cst_88 = arith.constant 0.000000e+00 : f32
    %203 = vector.broadcast %cst_88 : f32 to vector<16x128xf32>
    %204 = arith.select %202, %201, %203 : vector<16x128xi1>, vector<16x128xf32>
    %c0_89 = arith.constant 0 : index
    %c0_90 = arith.constant 0 : index
    %c0_91 = arith.constant 0 : index
    %205 = vector.load %arg4[%c0_89, %c0_90, %c0_91] : memref<8x16x128xf32, #tpu.memory_space<vmem>>, vector<1x16x128xf32>
    %206 = vector.shape_cast %205 : vector<1x16x128xf32> to vector<16x128xf32>
    %207 = vector.shape_cast %204 : vector<16x128xf32> to vector<1x16x128xf32>
    tpu.vector_store %arg4[%c0_89, %c0_90, %c0_91], %207 {strides = array<i32>} : memref<8x16x128xf32, #tpu.memory_space<vmem>>, vector<1x16x128xf32>,
    %c0_92 = arith.constant 0 : index
    %c0_93 = arith.constant 0 : index
    %c0_94 = arith.constant 0 : index
    %208 = vector.load %arg2[%c0_92, %c0_93, %c0_94] : memref<1x16x128xf32, #tpu.memory_space<vmem>>, vector<1x16x128xf32>
    %209 = vector.shape_cast %208 : vector<1x16x128xf32> to vector<16x128xf32>
    %cst_95 = arith.constant 1.000000e-01 : f32
    %cst_96 = arith.constant 0.899999976 : f32
    %210 = vector.broadcast %cst_95 : f32 to vector<16x128xf32>
    %211 = arith.maximumf %210, %209 : vector<16x128xf32>
    %212 = vector.broadcast %cst_96 : f32 to vector<16x128xf32>
    %213 = arith.minimumf %212, %211 : vector<16x128xf32>
    %214 = math.log %213 : vector<16x128xf32>
    %cst_97 = arith.constant 1.000000e+00 : f32
    %215 = vector.broadcast %cst_97 : f32 to vector<16x128xf32>
    %216 = arith.subf %215, %213 : vector<16x128xf32>
    %217 = math.log %216 : vector<16x128xf32>
    %218 = arith.subf %214, %217 : vector<16x128xf32>
    %c0_i32_98 = arith.constant 0 : i32
    %c1_i32_99 = arith.constant 1 : i32
    %219 = tpu.dynamic_rotate %218 by %c1_i32_99 dim 0 : vector<16x128xf32>, i32 -> vector<16x128xf32>
    %c1_i32_100 = arith.constant 1 : i32
    %220 = tpu.dynamic_rotate %219 by %c1_i32_100 dim 1 : vector<16x128xf32>, i32 -> vector<16x128xf32>
    %c0_101 = arith.constant 0 : index
    %c0_102 = arith.constant 0 : index
    %c0_103 = arith.constant 0 : index
    %221 = vector.load %arg4[%c0_101, %c0_102, %c0_103] : memref<8x16x128xf32, #tpu.memory_space<vmem>>, vector<1x16x128xf32>
    %222 = vector.shape_cast %221 : vector<1x16x128xf32> to vector<16x128xf32>
    %223 = arith.mulf %222, %220 : vector<16x128xf32>
    %224 = arith.addf %218, %223 : vector<16x128xf32>
    %c1_104 = arith.constant 1 : index
    %c0_105 = arith.constant 0 : index
    %c0_106 = arith.constant 0 : index
    %225 = vector.load %arg4[%c1_104, %c0_105, %c0_106] : memref<8x16x128xf32, #tpu.memory_space<vmem>>, vector<1x16x128xf32>
    %226 = vector.shape_cast %225 : vector<1x16x128xf32> to vector<16x128xf32>
    %227 = arith.mulf %226, %219 : vector<16x128xf32>
    %228 = arith.addf %224, %227 : vector<16x128xf32>
    %c127_i32_107 = arith.constant 127 : i32
    %229 = tpu.dynamic_rotate %219 by %c127_i32_107 dim 1 : vector<16x128xf32>, i32 -> vector<16x128xf32>
    %c2_108 = arith.constant 2 : index
    %c0_109 = arith.constant 0 : index
    %c0_110 = arith.constant 0 : index
    %230 = vector.load %arg4[%c2_108, %c0_109, %c0_110] : memref<8x16x128xf32, #tpu.memory_space<vmem>>, vector<1x16x128xf32>
    %231 = vector.shape_cast %230 : vector<1x16x128xf32> to vector<16x128xf32>
    %232 = arith.mulf %231, %229 : vector<16x128xf32>
    %233 = arith.addf %228, %232 : vector<16x128xf32>
    %c1_i32_111 = arith.constant 1 : i32
    %234 = tpu.dynamic_rotate %218 by %c1_i32_111 dim 1 : vector<16x128xf32>, i32 -> vector<16x128xf32>
    %c3_112 = arith.constant 3 : index
    %c0_113 = arith.constant 0 : index
    %c0_114 = arith.constant 0 : index
    %235 = vector.load %arg4[%c3_112, %c0_113, %c0_114] : memref<8x16x128xf32, #tpu.memory_space<vmem>>, vector<1x16x128xf32>
    %236 = vector.shape_cast %235 : vector<1x16x128xf32> to vector<16x128xf32>
    %237 = arith.mulf %236, %234 : vector<16x128xf32>
    %238 = arith.addf %233, %237 : vector<16x128xf32>
    %c127_i32_115 = arith.constant 127 : i32
    %239 = tpu.dynamic_rotate %218 by %c127_i32_115 dim 1 : vector<16x128xf32>, i32 -> vector<16x128xf32>
    %c4_116 = arith.constant 4 : index
    %c0_117 = arith.constant 0 : index
    %c0_118 = arith.constant 0 : index
    %240 = vector.load %arg4[%c4_116, %c0_117, %c0_118] : memref<8x16x128xf32, #tpu.memory_space<vmem>>, vector<1x16x128xf32>
    %241 = vector.shape_cast %240 : vector<1x16x128xf32> to vector<16x128xf32>
    %242 = arith.mulf %241, %239 : vector<16x128xf32>
    %243 = arith.addf %238, %242 : vector<16x128xf32>
    %c15_i32_119 = arith.constant 15 : i32
    %244 = tpu.dynamic_rotate %218 by %c15_i32_119 dim 0 : vector<16x128xf32>, i32 -> vector<16x128xf32>
    %c1_i32_120 = arith.constant 1 : i32
    %245 = tpu.dynamic_rotate %244 by %c1_i32_120 dim 1 : vector<16x128xf32>, i32 -> vector<16x128xf32>
    %c5_121 = arith.constant 5 : index
    %c0_122 = arith.constant 0 : index
    %c0_123 = arith.constant 0 : index
    %246 = vector.load %arg4[%c5_121, %c0_122, %c0_123] : memref<8x16x128xf32, #tpu.memory_space<vmem>>, vector<1x16x128xf32>
    %247 = vector.shape_cast %246 : vector<1x16x128xf32> to vector<16x128xf32>
    %248 = arith.mulf %247, %245 : vector<16x128xf32>
    %249 = arith.addf %243, %248 : vector<16x128xf32>
    %c6_124 = arith.constant 6 : index
    %c0_125 = arith.constant 0 : index
    %c0_126 = arith.constant 0 : index
    %250 = vector.load %arg4[%c6_124, %c0_125, %c0_126] : memref<8x16x128xf32, #tpu.memory_space<vmem>>, vector<1x16x128xf32>
    %251 = vector.shape_cast %250 : vector<1x16x128xf32> to vector<16x128xf32>
    %252 = arith.mulf %251, %244 : vector<16x128xf32>
    %253 = arith.addf %249, %252 : vector<16x128xf32>
    %c127_i32_127 = arith.constant 127 : i32
    %254 = tpu.dynamic_rotate %244 by %c127_i32_127 dim 1 : vector<16x128xf32>, i32 -> vector<16x128xf32>
    %c7_128 = arith.constant 7 : index
    %c0_129 = arith.constant 0 : index
    %c0_130 = arith.constant 0 : index
    %255 = vector.load %arg4[%c7_128, %c0_129, %c0_130] : memref<8x16x128xf32, #tpu.memory_space<vmem>>, vector<1x16x128xf32>
    %256 = vector.shape_cast %255 : vector<1x16x128xf32> to vector<16x128xf32>
    %257 = arith.mulf %256, %254 : vector<16x128xf32>
    %258 = arith.addf %253, %257 : vector<16x128xf32>
    %cst_131 = arith.constant -2.19722462 : f32
    %cst_132 = arith.constant 2.19722462 : f32
    %259 = vector.broadcast %cst_131 : f32 to vector<16x128xf32>
    %260 = arith.maximumf %259, %258 : vector<16x128xf32>
    %261 = vector.broadcast %cst_132 : f32 to vector<16x128xf32>
    %262 = arith.minimumf %261, %260 : vector<16x128xf32>
    %c1_i32_133 = arith.constant 1 : i32
    %c1_i32_134 = arith.constant 1 : i32
    %263 = tpu.dynamic_rotate %262 by %c1_i32_134 dim 0 : vector<16x128xf32>, i32 -> vector<16x128xf32>
    %c1_i32_135 = arith.constant 1 : i32
    %264 = tpu.dynamic_rotate %263 by %c1_i32_135 dim 1 : vector<16x128xf32>, i32 -> vector<16x128xf32>
    %c0_136 = arith.constant 0 : index
    %c0_137 = arith.constant 0 : index
    %c0_138 = arith.constant 0 : index
    %265 = vector.load %arg4[%c0_136, %c0_137, %c0_138] : memref<8x16x128xf32, #tpu.memory_space<vmem>>, vector<1x16x128xf32>
    %266 = vector.shape_cast %265 : vector<1x16x128xf32> to vector<16x128xf32>
    %267 = arith.mulf %266, %264 : vector<16x128xf32>
    %268 = arith.addf %262, %267 : vector<16x128xf32>
    %c1_139 = arith.constant 1 : index
    %c0_140 = arith.constant 0 : index
    %c0_141 = arith.constant 0 : index
    %269 = vector.load %arg4[%c1_139, %c0_140, %c0_141] : memref<8x16x128xf32, #tpu.memory_space<vmem>>, vector<1x16x128xf32>
    %270 = vector.shape_cast %269 : vector<1x16x128xf32> to vector<16x128xf32>
    %271 = arith.mulf %270, %263 : vector<16x128xf32>
    %272 = arith.addf %268, %271 : vector<16x128xf32>
    %c127_i32_142 = arith.constant 127 : i32
    %273 = tpu.dynamic_rotate %263 by %c127_i32_142 dim 1 : vector<16x128xf32>, i32 -> vector<16x128xf32>
    %c2_143 = arith.constant 2 : index
    %c0_144 = arith.constant 0 : index
    %c0_145 = arith.constant 0 : index
    %274 = vector.load %arg4[%c2_143, %c0_144, %c0_145] : memref<8x16x128xf32, #tpu.memory_space<vmem>>, vector<1x16x128xf32>
    %275 = vector.shape_cast %274 : vector<1x16x128xf32> to vector<16x128xf32>
    %276 = arith.mulf %275, %273 : vector<16x128xf32>
    %277 = arith.addf %272, %276 : vector<16x128xf32>
    %c1_i32_146 = arith.constant 1 : i32
    %278 = tpu.dynamic_rotate %262 by %c1_i32_146 dim 1 : vector<16x128xf32>, i32 -> vector<16x128xf32>
    %c3_147 = arith.constant 3 : index
    %c0_148 = arith.constant 0 : index
    %c0_149 = arith.constant 0 : index
    %279 = vector.load %arg4[%c3_147, %c0_148, %c0_149] : memref<8x16x128xf32, #tpu.memory_space<vmem>>, vector<1x16x128xf32>
    %280 = vector.shape_cast %279 : vector<1x16x128xf32> to vector<16x128xf32>
    %281 = arith.mulf %280, %278 : vector<16x128xf32>
    %282 = arith.addf %277, %281 : vector<16x128xf32>
    %c127_i32_150 = arith.constant 127 : i32
    %283 = tpu.dynamic_rotate %262 by %c127_i32_150 dim 1 : vector<16x128xf32>, i32 -> vector<16x128xf32>
    %c4_151 = arith.constant 4 : index
    %c0_152 = arith.constant 0 : index
    %c0_153 = arith.constant 0 : index
    %284 = vector.load %arg4[%c4_151, %c0_152, %c0_153] : memref<8x16x128xf32, #tpu.memory_space<vmem>>, vector<1x16x128xf32>
    %285 = vector.shape_cast %284 : vector<1x16x128xf32> to vector<16x128xf32>
    %286 = arith.mulf %285, %283 : vector<16x128xf32>
    %287 = arith.addf %282, %286 : vector<16x128xf32>
    %c15_i32_154 = arith.constant 15 : i32
    %288 = tpu.dynamic_rotate %262 by %c15_i32_154 dim 0 : vector<16x128xf32>, i32 -> vector<16x128xf32>
    %c1_i32_155 = arith.constant 1 : i32
    %289 = tpu.dynamic_rotate %288 by %c1_i32_155 dim 1 : vector<16x128xf32>, i32 -> vector<16x128xf32>
    %c5_156 = arith.constant 5 : index
    %c0_157 = arith.constant 0 : index
    %c0_158 = arith.constant 0 : index
    %290 = vector.load %arg4[%c5_156, %c0_157, %c0_158] : memref<8x16x128xf32, #tpu.memory_space<vmem>>, vector<1x16x128xf32>
    %291 = vector.shape_cast %290 : vector<1x16x128xf32> to vector<16x128xf32>
    %292 = arith.mulf %291, %289 : vector<16x128xf32>
    %293 = arith.addf %287, %292 : vector<16x128xf32>
    %c6_159 = arith.constant 6 : index
    %c0_160 = arith.constant 0 : index
    %c0_161 = arith.constant 0 : index
    %294 = vector.load %arg4[%c6_159, %c0_160, %c0_161] : memref<8x16x128xf32, #tpu.memory_space<vmem>>, vector<1x16x128xf32>
    %295 = vector.shape_cast %294 : vector<1x16x128xf32> to vector<16x128xf32>
    %296 = arith.mulf %295, %288 : vector<16x128xf32>
    %297 = arith.addf %293, %296 : vector<16x128xf32>
    %c127_i32_162 = arith.constant 127 : i32
    %298 = tpu.dynamic_rotate %288 by %c127_i32_162 dim 1 : vector<16x128xf32>, i32 -> vector<16x128xf32>
    %c7_163 = arith.constant 7 : index
    %c0_164 = arith.constant 0 : index
    %c0_165 = arith.constant 0 : index
    %299 = vector.load %arg4[%c7_163, %c0_164, %c0_165] : memref<8x16x128xf32, #tpu.memory_space<vmem>>, vector<1x16x128xf32>
    %300 = vector.shape_cast %299 : vector<1x16x128xf32> to vector<16x128xf32>
    %301 = arith.mulf %300, %298 : vector<16x128xf32>
    %302 = arith.addf %297, %301 : vector<16x128xf32>
    %cst_166 = arith.constant -2.19722462 : f32
    %cst_167 = arith.constant 2.19722462 : f32
    %303 = vector.broadcast %cst_166 : f32 to vector<16x128xf32>
    %304 = arith.maximumf %303, %302 : vector<16x128xf32>
    %305 = vector.broadcast %cst_167 : f32 to vector<16x128xf32>
    %306 = arith.minimumf %305, %304 : vector<16x128xf32>
    %c2_i32 = arith.constant 2 : i32
    %c1_i32_168 = arith.constant 1 : i32
    %307 = tpu.dynamic_rotate %306 by %c1_i32_168 dim 0 : vector<16x128xf32>, i32 -> vector<16x128xf32>
    %c1_i32_169 = arith.constant 1 : i32
    %308 = tpu.dynamic_rotate %307 by %c1_i32_169 dim 1 : vector<16x128xf32>, i32 -> vector<16x128xf32>
    %c0_170 = arith.constant 0 : index
    %c0_171 = arith.constant 0 : index
    %c0_172 = arith.constant 0 : index
    %309 = vector.load %arg4[%c0_170, %c0_171, %c0_172] : memref<8x16x128xf32, #tpu.memory_space<vmem>>, vector<1x16x128xf32>
    %310 = vector.shape_cast %309 : vector<1x16x128xf32> to vector<16x128xf32>
    %311 = arith.mulf %310, %308 : vector<16x128xf32>
    %312 = arith.addf %306, %311 : vector<16x128xf32>
    %c1_173 = arith.constant 1 : index
    %c0_174 = arith.constant 0 : index
    %c0_175 = arith.constant 0 : index
    %313 = vector.load %arg4[%c1_173, %c0_174, %c0_175] : memref<8x16x128xf32, #tpu.memory_space<vmem>>, vector<1x16x128xf32>
    %314 = vector.shape_cast %313 : vector<1x16x128xf32> to vector<16x128xf32>
    %315 = arith.mulf %314, %307 : vector<16x128xf32>
    %316 = arith.addf %312, %315 : vector<16x128xf32>
    %c127_i32_176 = arith.constant 127 : i32
    %317 = tpu.dynamic_rotate %307 by %c127_i32_176 dim 1 : vector<16x128xf32>, i32 -> vector<16x128xf32>
    %c2_177 = arith.constant 2 : index
    %c0_178 = arith.constant 0 : index
    %c0_179 = arith.constant 0 : index
    %318 = vector.load %arg4[%c2_177, %c0_178, %c0_179] : memref<8x16x128xf32, #tpu.memory_space<vmem>>, vector<1x16x128xf32>
    %319 = vector.shape_cast %318 : vector<1x16x128xf32> to vector<16x128xf32>
    %320 = arith.mulf %319, %317 : vector<16x128xf32>
    %321 = arith.addf %316, %320 : vector<16x128xf32>
    %c1_i32_180 = arith.constant 1 : i32
    %322 = tpu.dynamic_rotate %306 by %c1_i32_180 dim 1 : vector<16x128xf32>, i32 -> vector<16x128xf32>
    %c3_181 = arith.constant 3 : index
    %c0_182 = arith.constant 0 : index
    %c0_183 = arith.constant 0 : index
    %323 = vector.load %arg4[%c3_181, %c0_182, %c0_183] : memref<8x16x128xf32, #tpu.memory_space<vmem>>, vector<1x16x128xf32>
    %324 = vector.shape_cast %323 : vector<1x16x128xf32> to vector<16x128xf32>
    %325 = arith.mulf %324, %322 : vector<16x128xf32>
    %326 = arith.addf %321, %325 : vector<16x128xf32>
    %c127_i32_184 = arith.constant 127 : i32
    %327 = tpu.dynamic_rotate %306 by %c127_i32_184 dim 1 : vector<16x128xf32>, i32 -> vector<16x128xf32>
    %c4_185 = arith.constant 4 : index
    %c0_186 = arith.constant 0 : index
    %c0_187 = arith.constant 0 : index
    %328 = vector.load %arg4[%c4_185, %c0_186, %c0_187] : memref<8x16x128xf32, #tpu.memory_space<vmem>>, vector<1x16x128xf32>
    %329 = vector.shape_cast %328 : vector<1x16x128xf32> to vector<16x128xf32>
    %330 = arith.mulf %329, %327 : vector<16x128xf32>
    %331 = arith.addf %326, %330 : vector<16x128xf32>
    %c15_i32_188 = arith.constant 15 : i32
    %332 = tpu.dynamic_rotate %306 by %c15_i32_188 dim 0 : vector<16x128xf32>, i32 -> vector<16x128xf32>
    %c1_i32_189 = arith.constant 1 : i32
    %333 = tpu.dynamic_rotate %332 by %c1_i32_189 dim 1 : vector<16x128xf32>, i32 -> vector<16x128xf32>
    %c5_190 = arith.constant 5 : index
    %c0_191 = arith.constant 0 : index
    %c0_192 = arith.constant 0 : index
    %334 = vector.load %arg4[%c5_190, %c0_191, %c0_192] : memref<8x16x128xf32, #tpu.memory_space<vmem>>, vector<1x16x128xf32>
    %335 = vector.shape_cast %334 : vector<1x16x128xf32> to vector<16x128xf32>
    %336 = arith.mulf %335, %333 : vector<16x128xf32>
    %337 = arith.addf %331, %336 : vector<16x128xf32>
    %c6_193 = arith.constant 6 : index
    %c0_194 = arith.constant 0 : index
    %c0_195 = arith.constant 0 : index
    %338 = vector.load %arg4[%c6_193, %c0_194, %c0_195] : memref<8x16x128xf32, #tpu.memory_space<vmem>>, vector<1x16x128xf32>
    %339 = vector.shape_cast %338 : vector<1x16x128xf32> to vector<16x128xf32>
    %340 = arith.mulf %339, %332 : vector<16x128xf32>
    %341 = arith.addf %337, %340 : vector<16x128xf32>
    %c127_i32_196 = arith.constant 127 : i32
    %342 = tpu.dynamic_rotate %332 by %c127_i32_196 dim 1 : vector<16x128xf32>, i32 -> vector<16x128xf32>
    %c7_197 = arith.constant 7 : index
    %c0_198 = arith.constant 0 : index
    %c0_199 = arith.constant 0 : index
    %343 = vector.load %arg4[%c7_197, %c0_198, %c0_199] : memref<8x16x128xf32, #tpu.memory_space<vmem>>, vector<1x16x128xf32>
    %344 = vector.shape_cast %343 : vector<1x16x128xf32> to vector<16x128xf32>
    %345 = arith.mulf %344, %342 : vector<16x128xf32>
    %346 = arith.addf %341, %345 : vector<16x128xf32>
    %cst_200 = arith.constant -2.19722462 : f32
    %cst_201 = arith.constant 2.19722462 : f32
    %347 = vector.broadcast %cst_200 : f32 to vector<16x128xf32>
    %348 = arith.maximumf %347, %346 : vector<16x128xf32>
    %349 = vector.broadcast %cst_201 : f32 to vector<16x128xf32>
    %350 = arith.minimumf %349, %348 : vector<16x128xf32>
    %c3_i32 = arith.constant 3 : i32
    %c1_i32_202 = arith.constant 1 : i32
    %351 = tpu.dynamic_rotate %350 by %c1_i32_202 dim 0 : vector<16x128xf32>, i32 -> vector<16x128xf32>
    %c1_i32_203 = arith.constant 1 : i32
    %352 = tpu.dynamic_rotate %351 by %c1_i32_203 dim 1 : vector<16x128xf32>, i32 -> vector<16x128xf32>
    %c0_204 = arith.constant 0 : index
    %c0_205 = arith.constant 0 : index
    %c0_206 = arith.constant 0 : index
    %353 = vector.load %arg4[%c0_204, %c0_205, %c0_206] : memref<8x16x128xf32, #tpu.memory_space<vmem>>, vector<1x16x128xf32>
    %354 = vector.shape_cast %353 : vector<1x16x128xf32> to vector<16x128xf32>
    %355 = arith.mulf %354, %352 : vector<16x128xf32>
    %356 = arith.addf %350, %355 : vector<16x128xf32>
    %c1_207 = arith.constant 1 : index
    %c0_208 = arith.constant 0 : index
    %c0_209 = arith.constant 0 : index
    %357 = vector.load %arg4[%c1_207, %c0_208, %c0_209] : memref<8x16x128xf32, #tpu.memory_space<vmem>>, vector<1x16x128xf32>
    %358 = vector.shape_cast %357 : vector<1x16x128xf32> to vector<16x128xf32>
    %359 = arith.mulf %358, %351 : vector<16x128xf32>
    %360 = arith.addf %356, %359 : vector<16x128xf32>
    %c127_i32_210 = arith.constant 127 : i32
    %361 = tpu.dynamic_rotate %351 by %c127_i32_210 dim 1 : vector<16x128xf32>, i32 -> vector<16x128xf32>
    %c2_211 = arith.constant 2 : index
    %c0_212 = arith.constant 0 : index
    %c0_213 = arith.constant 0 : index
    %362 = vector.load %arg4[%c2_211, %c0_212, %c0_213] : memref<8x16x128xf32, #tpu.memory_space<vmem>>, vector<1x16x128xf32>
    %363 = vector.shape_cast %362 : vector<1x16x128xf32> to vector<16x128xf32>
    %364 = arith.mulf %363, %361 : vector<16x128xf32>
    %365 = arith.addf %360, %364 : vector<16x128xf32>
    %c1_i32_214 = arith.constant 1 : i32
    %366 = tpu.dynamic_rotate %350 by %c1_i32_214 dim 1 : vector<16x128xf32>, i32 -> vector<16x128xf32>
    %c3_215 = arith.constant 3 : index
    %c0_216 = arith.constant 0 : index
    %c0_217 = arith.constant 0 : index
    %367 = vector.load %arg4[%c3_215, %c0_216, %c0_217] : memref<8x16x128xf32, #tpu.memory_space<vmem>>, vector<1x16x128xf32>
    %368 = vector.shape_cast %367 : vector<1x16x128xf32> to vector<16x128xf32>
    %369 = arith.mulf %368, %366 : vector<16x128xf32>
    %370 = arith.addf %365, %369 : vector<16x128xf32>
    %c127_i32_218 = arith.constant 127 : i32
    %371 = tpu.dynamic_rotate %350 by %c127_i32_218 dim 1 : vector<16x128xf32>, i32 -> vector<16x128xf32>
    %c4_219 = arith.constant 4 : index
    %c0_220 = arith.constant 0 : index
    %c0_221 = arith.constant 0 : index
    %372 = vector.load %arg4[%c4_219, %c0_220, %c0_221] : memref<8x16x128xf32, #tpu.memory_space<vmem>>, vector<1x16x128xf32>
    %373 = vector.shape_cast %372 : vector<1x16x128xf32> to vector<16x128xf32>
    %374 = arith.mulf %373, %371 : vector<16x128xf32>
    %375 = arith.addf %370, %374 : vector<16x128xf32>
    %c15_i32_222 = arith.constant 15 : i32
    %376 = tpu.dynamic_rotate %350 by %c15_i32_222 dim 0 : vector<16x128xf32>, i32 -> vector<16x128xf32>
    %c1_i32_223 = arith.constant 1 : i32
    %377 = tpu.dynamic_rotate %376 by %c1_i32_223 dim 1 : vector<16x128xf32>, i32 -> vector<16x128xf32>
    %c5_224 = arith.constant 5 : index
    %c0_225 = arith.constant 0 : index
    %c0_226 = arith.constant 0 : index
    %378 = vector.load %arg4[%c5_224, %c0_225, %c0_226] : memref<8x16x128xf32, #tpu.memory_space<vmem>>, vector<1x16x128xf32>
    %379 = vector.shape_cast %378 : vector<1x16x128xf32> to vector<16x128xf32>
    %380 = arith.mulf %379, %377 : vector<16x128xf32>
    %381 = arith.addf %375, %380 : vector<16x128xf32>
    %c6_227 = arith.constant 6 : index
    %c0_228 = arith.constant 0 : index
    %c0_229 = arith.constant 0 : index
    %382 = vector.load %arg4[%c6_227, %c0_228, %c0_229] : memref<8x16x128xf32, #tpu.memory_space<vmem>>, vector<1x16x128xf32>
    %383 = vector.shape_cast %382 : vector<1x16x128xf32> to vector<16x128xf32>
    %384 = arith.mulf %383, %376 : vector<16x128xf32>
    %385 = arith.addf %381, %384 : vector<16x128xf32>
    %c127_i32_230 = arith.constant 127 : i32
    %386 = tpu.dynamic_rotate %376 by %c127_i32_230 dim 1 : vector<16x128xf32>, i32 -> vector<16x128xf32>
    %c7_231 = arith.constant 7 : index
    %c0_232 = arith.constant 0 : index
    %c0_233 = arith.constant 0 : index
    %387 = vector.load %arg4[%c7_231, %c0_232, %c0_233] : memref<8x16x128xf32, #tpu.memory_space<vmem>>, vector<1x16x128xf32>
    %388 = vector.shape_cast %387 : vector<1x16x128xf32> to vector<16x128xf32>
    %389 = arith.mulf %388, %386 : vector<16x128xf32>
    %390 = arith.addf %385, %389 : vector<16x128xf32>
    %cst_234 = arith.constant -2.19722462 : f32
    %cst_235 = arith.constant 2.19722462 : f32
    %391 = vector.broadcast %cst_234 : f32 to vector<16x128xf32>
    %392 = arith.maximumf %391, %390 : vector<16x128xf32>
    %393 = vector.broadcast %cst_235 : f32 to vector<16x128xf32>
    %394 = arith.minimumf %393, %392 : vector<16x128xf32>
    %c4_i32 = arith.constant 4 : i32
    %c1_i32_236 = arith.constant 1 : i32
    %395 = tpu.dynamic_rotate %394 by %c1_i32_236 dim 0 : vector<16x128xf32>, i32 -> vector<16x128xf32>
    %c1_i32_237 = arith.constant 1 : i32
    %396 = tpu.dynamic_rotate %395 by %c1_i32_237 dim 1 : vector<16x128xf32>, i32 -> vector<16x128xf32>
    %c0_238 = arith.constant 0 : index
    %c0_239 = arith.constant 0 : index
    %c0_240 = arith.constant 0 : index
    %397 = vector.load %arg4[%c0_238, %c0_239, %c0_240] : memref<8x16x128xf32, #tpu.memory_space<vmem>>, vector<1x16x128xf32>
    %398 = vector.shape_cast %397 : vector<1x16x128xf32> to vector<16x128xf32>
    %399 = arith.mulf %398, %396 : vector<16x128xf32>
    %400 = arith.addf %394, %399 : vector<16x128xf32>
    %c1_241 = arith.constant 1 : index
    %c0_242 = arith.constant 0 : index
    %c0_243 = arith.constant 0 : index
    %401 = vector.load %arg4[%c1_241, %c0_242, %c0_243] : memref<8x16x128xf32, #tpu.memory_space<vmem>>, vector<1x16x128xf32>
    %402 = vector.shape_cast %401 : vector<1x16x128xf32> to vector<16x128xf32>
    %403 = arith.mulf %402, %395 : vector<16x128xf32>
    %404 = arith.addf %400, %403 : vector<16x128xf32>
    %c127_i32_244 = arith.constant 127 : i32
    %405 = tpu.dynamic_rotate %395 by %c127_i32_244 dim 1 : vector<16x128xf32>, i32 -> vector<16x128xf32>
    %c2_245 = arith.constant 2 : index
    %c0_246 = arith.constant 0 : index
    %c0_247 = arith.constant 0 : index
    %406 = vector.load %arg4[%c2_245, %c0_246, %c0_247] : memref<8x16x128xf32, #tpu.memory_space<vmem>>, vector<1x16x128xf32>
    %407 = vector.shape_cast %406 : vector<1x16x128xf32> to vector<16x128xf32>
    %408 = arith.mulf %407, %405 : vector<16x128xf32>
    %409 = arith.addf %404, %408 : vector<16x128xf32>
    %c1_i32_248 = arith.constant 1 : i32
    %410 = tpu.dynamic_rotate %394 by %c1_i32_248 dim 1 : vector<16x128xf32>, i32 -> vector<16x128xf32>
    %c3_249 = arith.constant 3 : index
    %c0_250 = arith.constant 0 : index
    %c0_251 = arith.constant 0 : index
    %411 = vector.load %arg4[%c3_249, %c0_250, %c0_251] : memref<8x16x128xf32, #tpu.memory_space<vmem>>, vector<1x16x128xf32>
    %412 = vector.shape_cast %411 : vector<1x16x128xf32> to vector<16x128xf32>
    %413 = arith.mulf %412, %410 : vector<16x128xf32>
    %414 = arith.addf %409, %413 : vector<16x128xf32>
    %c127_i32_252 = arith.constant 127 : i32
    %415 = tpu.dynamic_rotate %394 by %c127_i32_252 dim 1 : vector<16x128xf32>, i32 -> vector<16x128xf32>
    %c4_253 = arith.constant 4 : index
    %c0_254 = arith.constant 0 : index
    %c0_255 = arith.constant 0 : index
    %416 = vector.load %arg4[%c4_253, %c0_254, %c0_255] : memref<8x16x128xf32, #tpu.memory_space<vmem>>, vector<1x16x128xf32>
    %417 = vector.shape_cast %416 : vector<1x16x128xf32> to vector<16x128xf32>
    %418 = arith.mulf %417, %415 : vector<16x128xf32>
    %419 = arith.addf %414, %418 : vector<16x128xf32>
    %c15_i32_256 = arith.constant 15 : i32
    %420 = tpu.dynamic_rotate %394 by %c15_i32_256 dim 0 : vector<16x128xf32>, i32 -> vector<16x128xf32>
    %c1_i32_257 = arith.constant 1 : i32
    %421 = tpu.dynamic_rotate %420 by %c1_i32_257 dim 1 : vector<16x128xf32>, i32 -> vector<16x128xf32>
    %c5_258 = arith.constant 5 : index
    %c0_259 = arith.constant 0 : index
    %c0_260 = arith.constant 0 : index
    %422 = vector.load %arg4[%c5_258, %c0_259, %c0_260] : memref<8x16x128xf32, #tpu.memory_space<vmem>>, vector<1x16x128xf32>
    %423 = vector.shape_cast %422 : vector<1x16x128xf32> to vector<16x128xf32>
    %424 = arith.mulf %423, %421 : vector<16x128xf32>
    %425 = arith.addf %419, %424 : vector<16x128xf32>
    %c6_261 = arith.constant 6 : index
    %c0_262 = arith.constant 0 : index
    %c0_263 = arith.constant 0 : index
    %426 = vector.load %arg4[%c6_261, %c0_262, %c0_263] : memref<8x16x128xf32, #tpu.memory_space<vmem>>, vector<1x16x128xf32>
    %427 = vector.shape_cast %426 : vector<1x16x128xf32> to vector<16x128xf32>
    %428 = arith.mulf %427, %420 : vector<16x128xf32>
    %429 = arith.addf %425, %428 : vector<16x128xf32>
    %c127_i32_264 = arith.constant 127 : i32
    %430 = tpu.dynamic_rotate %420 by %c127_i32_264 dim 1 : vector<16x128xf32>, i32 -> vector<16x128xf32>
    %c7_265 = arith.constant 7 : index
    %c0_266 = arith.constant 0 : index
    %c0_267 = arith.constant 0 : index
    %431 = vector.load %arg4[%c7_265, %c0_266, %c0_267] : memref<8x16x128xf32, #tpu.memory_space<vmem>>, vector<1x16x128xf32>
    %432 = vector.shape_cast %431 : vector<1x16x128xf32> to vector<16x128xf32>
    %433 = arith.mulf %432, %430 : vector<16x128xf32>
    %434 = arith.addf %429, %433 : vector<16x128xf32>
    %cst_268 = arith.constant -2.19722462 : f32
    %cst_269 = arith.constant 2.19722462 : f32
    %435 = vector.broadcast %cst_268 : f32 to vector<16x128xf32>
    %436 = arith.maximumf %435, %434 : vector<16x128xf32>
    %437 = vector.broadcast %cst_269 : f32 to vector<16x128xf32>
    %438 = arith.minimumf %437, %436 : vector<16x128xf32>
    %cst_270 = arith.constant 0.000000e+00 : f32
    %439 = vector.broadcast %cst_270 : f32 to vector<16x128xf32>
    %440 = arith.cmpf ogt, %438, %439 : vector<16x128xf32>
    %441 = arith.extui %440 : vector<16x128xi1> to vector<16x128xi32>
    %442 = arith.sitofp %441 : vector<16x128xi32> to vector<16x128xf32>
    %c0_271 = arith.constant 0 : index
    %c0_272 = arith.constant 0 : index
    %c0_273 = arith.constant 0 : index
    %443 = vector.load %arg3[%c0_271, %c0_272, %c0_273] : memref<1x16x128xf32, #tpu.memory_space<vmem>>, vector<1x16x128xf32>
    %444 = vector.shape_cast %443 : vector<1x16x128xf32> to vector<16x128xf32>
    %445 = vector.shape_cast %442 : vector<16x128xf32> to vector<1x16x128xf32>
    tpu.vector_store %arg3[%c0_271, %c0_272, %c0_273], %445 {strides = array<i32>} : memref<1x16x128xf32, #tpu.memory_space<vmem>>, vector<1x16x128xf32>,
    return
  }
  func.func @transform_0(%arg0: i32) -> (i32, i32, i32, i32) {
    %c0_i32 = arith.constant 0 : i32
    %c0_i32_0 = arith.constant 0 : i32
    %c0_i32_1 = arith.constant 0 : i32
    %c0_i32_2 = arith.constant 0 : i32
    return %arg0, %c0_i32, %c0_i32_0, %c0_i32_1 : i32, i32, i32, i32
  }
  func.func @transform_1(%arg0: i32) -> (i32, i32, i32) {
    %c0_i32 = arith.constant 0 : i32
    %c0_i32_0 = arith.constant 0 : i32
    %c0_i32_1 = arith.constant 0 : i32
    return %arg0, %c0_i32, %c0_i32_0 : i32, i32, i32
  }
  func.func @transform_2(%arg0: i32) -> (i32, i32, i32) {
    %c0_i32 = arith.constant 0 : i32
    %c0_i32_0 = arith.constant 0 : i32
    %c0_i32_1 = arith.constant 0 : i32
    return %arg0, %c0_i32, %c0_i32_0 : i32, i32, i32
  }
}

</mosaic_0001>

<llo_original>
// kernel: tpu_custom_call.1
$region0: #{tpu_custom_call.1}
  #allocation0 [shape = 'u32[]', space=smem, size = 0x4, offset = 0x4, fixed_abs, tag = 'smem constant byte address 0x4 - core index']
  #allocation1 [shape = 'u32[144,128]{1,0:T(1,128)}', space=vmem, size = 0x12000, scoped, tag = 'internal scratch']
  #allocation2 [shape = 'f32[8,16,128]{2,1,0:T(8,128)}', space=vmem, size = 0x10000, scoped, tag = 'scratch operand']
  %s0 = inlined_call_operand.hbm [shape: f32[2,4,16,128], index: 0, kind: input, shape index: {}]
  %s1 = inlined_call_operand.hbm [shape: f32[2,16,128], index: 1, kind: input, shape index: {}]
  %s2 = inlined_call_operand.hbm [shape: f32[2,16,128], index: 2, kind: output, shape index: {}]
  %s3 = sld [smem:[#allocation0]]
  $region49: #{tpu_custom_call.1} parent=0
    _
  %s5 = ssub.s32 1, %s3
  %s6 = scalar_select 0, %s5, %s3
  $region1: #{tpu_custom_call.1} parent=0
    #allocation3 [shape = 'u8[65536]{0}', space=vmem, size = 0x10000, scoped, tag = 'input window, operand 0']
    #allocation4 [shape = 's32[2]{0}', space=sflag, size = 0x8, scoped, tag = 'scoped memory for tpu_custom_call.1']
    #allocation5 [shape = 's32[2]{0}', space=sflag, size = 0x8, scoped, tag = 'scoped memory for tpu_custom_call.1']
    #allocation6 [shape = 'u8[16384]{0}', space=vmem, size = 0x4000, scoped, tag = 'input window, operand 1']
    #allocation7 [shape = 's32[2]{0}', space=sflag, size = 0x8, scoped, tag = 'scoped memory for tpu_custom_call.1']
    #allocation8 [shape = 'u8[16384]{0}', space=vmem, size = 0x4000, scoped, tag = 'output window, operand 0']
    %7 = vsyncpa [#allocation4], 0
    %s8 = scalar_lea.sflag [#allocation4], 1
    %9 = vsyncpa %s8, 0
    %10 = vsyncpa [#allocation7], 0
    %s11 = scalar_lea.sflag [#allocation7], 1
    %12 = vsyncpa %s11, 0
    %13 = vsyncpa [#allocation5], 0
    %s14 = scalar_lea.sflag [#allocation5], 1
    %15 = vsyncpa %s14, 0
    loop: start=0, step=1, limit=4
    $region2: #{tpu_custom_call.1} parent=1 // loop_pre_header
      _
    $region3: #{tpu_custom_call.1} parent=1 // loop_header
      %s17 = sphi 0, %s21
      %p18 = scmp.ge.s32.totalorder %s17, 4
      %s27 = sphi 0, %s29
      %s30 = sphi 0, %s27
      %s31 = sphi 0, %s30
      %s47 = sphi 0, %s31
      %s53 = sphi 0, %s55
      %s56 = sphi 0, %s53
      %s57 = sphi 0, %s56
      %s73 = sphi 0, %s57
      %s79 = sphi 0, %s81
      %s82 = sphi 0, %s79
      %s83 = sphi 0, %s82
      %s99 = sphi 0, %s83
    $region4: #{tpu_custom_call.1} parent=1 // loop_header_branch
      %20 = sbr.rel (%p18) target = $region8
    $region5: #{tpu_custom_call.1} parent=1 // loop_body
      %s22 = ssub.s32 %s17, 1
      %s23 = ssub.s32 %s17, 2
      %s24 = sadd.s32 %s17, 1
      %s25 = ssub.s32 %s17, %s24
      %p26 = scmp.eq.s32.totalorder %s25, 0
      %s28 = sadd.s32 %s27, 1
      %s29 = scalar_select %p26, %s27, %s28
      %p32 = pneg %p26
      %p33 = scmp.eq.s32.totalorder %s17, 1
      %p34 = por %p32, %p33
      %p35 = scmp.ne.s32.totalorder %s27, %s30
      %p36 = scmp.eq.s32.totalorder %s17, 0
      %p37 = por %p35, %p36
      %p38 = scmp.ne.s32.totalorder %s27, %s30
      %p39 = scmp.eq.s32.totalorder %s22, 1
      %p40 = por %p38, %p39
      %p41 = scmp.ne.s32.totalorder %s30, %s31
      %p42 = scmp.eq.s32.totalorder %s22, 0
      %p43 = por %p41, %p42
      %p44 = scmp.ne.s32.totalorder %s30, %s31
      %p45 = scmp.eq.s32.totalorder %s23, 1
      %p46 = por %p44, %p45
      %p48 = scmp.ne.s32.totalorder %s31, %s47
      %p49 = scmp.eq.s32.totalorder %s23, 0
      %p50 = por %p48, %p49
      %s51 = ssub.s32 %s17, %s24
      %p52 = scmp.eq.s32.totalorder %s51, 0
      %s54 = sadd.s32 %s53, 1
      %s55 = scalar_select %p52, %s53, %s54
      %p58 = pneg %p52
      %p59 = scmp.eq.s32.totalorder %s17, 1
      %p60 = por %p58, %p59
      %p61 = scmp.ne.s32.totalorder %s53, %s56
      %p62 = scmp.eq.s32.totalorder %s17, 0
      %p63 = por %p61, %p62
      %p64 = scmp.ne.s32.totalorder %s53, %s56
      %p65 = scmp.eq.s32.totalorder %s22, 1
      %p66 = por %p64, %p65
      %p67 = scmp.ne.s32.totalorder %s56, %s57
      %p68 = scmp.eq.s32.totalorder %s22, 0
      %p69 = por %p67, %p68
      %p70 = scmp.ne.s32.totalorder %s56, %s57
      %p71 = scmp.eq.s32.totalorder %s23, 1
      %p72 = por %p70, %p71
      %p74 = scmp.ne.s32.totalorder %s57, %s73
      %p75 = scmp.eq.s32.totalorder %s23, 0
      %p76 = por %p74, %p75
      %s77 = ssub.s32 %s17, %s24
      %p78 = scmp.eq.s32.totalorder %s77, 0
      %s80 = sadd.s32 %s79, 1
      %s81 = scalar_select %p78, %s79, %s80
      %p84 = pneg %p78
      %p85 = scmp.eq.s32.totalorder %s17, 1
      %p86 = por %p84, %p85
      %p87 = scmp.ne.s32.totalorder %s79, %s82
      %p88 = scmp.eq.s32.totalorder %s17, 0
      %p89 = por %p87, %p88
      %p90 = scmp.ne.s32.totalorder %s79, %s82
      %p91 = scmp.eq.s32.totalorder %s22, 1
      %p92 = por %p90, %p91
      %p93 = scmp.ne.s32.totalorder %s82, %s83
      %p94 = scmp.eq.s32.totalorder %s22, 0
      %p95 = por %p93, %p94
      %p96 = scmp.ne.s32.totalorder %s82, %s83
      %p97 = scmp.eq.s32.totalorder %s23, 1
      %p98 = por %p96, %p97
      %p100 = scmp.ne.s32.totalorder %s83, %s99
      %p101 = scmp.eq.s32.totalorder %s23, 0
      %p102 = por %p100, %p101
      %p103 = scmp.le.s32.totalorder 1, %s17
      %p104 = scmp.lt.s32.totalorder %s17, 3
      %p105 = pnand %p103, %p104
      %p106 = pneg %p105
      // Predicated region
      $region9: #{tpu_custom_call.1} parent=5 // pred_check
        _
      $region10: #{tpu_custom_call.1} parent=5 // pred_check_branch
        %108 = sbr.rel (%p105) target = $region12
      $region11: #{tpu_custom_call.1} parent=5 // pred_region
        %s109 = ssub.s32 %s17, 1
      $region12: #{tpu_custom_call.1} parent=5 // pred_fallthru
        _
      %p110 = scmp.lt.s32.totalorder %s17, 2
      // Predicated region
      $region13: #{tpu_custom_call.1} parent=5 // pred_check
        %p111 = pneg %p110
      $region14: #{tpu_custom_call.1} parent=5 // pred_check_branch
        %113 = sbr.rel (%p111) target = $region16
      $region15: #{tpu_custom_call.1} parent=5 // pred_region
        // Predicated region
        $region17: #{tpu_custom_call.1} parent=15 // pred_check
          %p114 = pneg %p37
        $region18: #{tpu_custom_call.1} parent=15 // pred_check_branch
          %116 = sbr.rel (%p114) target = $region20
        $region19: #{tpu_custom_call.1} parent=15 // pred_region
          %s117 = sand.u32 %s27, 1
          %s118 = scalar_lea.sflag [#allocation4], %s117
          %s119 = sand.u32 %s27, 1
          %s120 = smul.addr %s119, 64
          %s121 = scalar_lea.vmem [#allocation3], %s120
          %s123 = ssub.s32 1024, 1024
          %124 = vsyncadd %s118, %s123
          %s125 = smul.addr %s17, 8
          %s126 = smul.addr %s125, 128
          %s127 = scalar_lea.hbm %s0, %s126
          %s128 = sshll.u32 %s121, 4
          %s129 = int_to_ptr.vmem [resolvable:$true] %s128
          %134 = dma.hbm_to_vmem [thread:$0]  %s127, 1024, %s129, %s118, 128, 128, 8
        $region20: #{tpu_custom_call.1} parent=15 // pred_fallthru
          _
        // Predicated region
        $region21: #{tpu_custom_call.1} parent=15 // pred_check
          %p135 = pneg %p63
        $region22: #{tpu_custom_call.1} parent=15 // pred_check_branch
          %137 = sbr.rel (%p135) target = $region24
        $region23: #{tpu_custom_call.1} parent=15 // pred_region
          %s138 = sand.u32 %s53, 1
          %s139 = scalar_lea.sflag [#allocation7], %s138
          %s140 = sand.u32 %s53, 1
          %s141 = smul.addr %s140, 16
          %s142 = scalar_lea.vmem [#allocation6], %s141
          %s144 = ssub.s32 256, 256
          %145 = vsyncadd %s139, %s144
          %s146 = smul.addr %s17, 2
          %s147 = smul.addr %s146, 128
          %s148 = scalar_lea.hbm %s1, %s147
          %s149 = sshll.u32 %s142, 4
          %s150 = int_to_ptr.vmem [resolvable:$true] %s149
          %155 = dma.hbm_to_vmem [thread:$0]  %s148, 256, %s150, %s139, 128, 128, 8
        $region24: #{tpu_custom_call.1} parent=15 // pred_fallthru
          _
      $region16: #{tpu_custom_call.1} parent=5 // pred_fallthru
        _
      %p156 = scmp.le.s32.totalorder 1, %s17
      %p157 = scmp.lt.s32.totalorder %s17, 3
      %p158 = pnand %p156, %p157
      %p159 = pneg %p158
      // Predicated region
      $region25: #{tpu_custom_call.1} parent=5 // pred_check
        _
      $region26: #{tpu_custom_call.1} parent=5 // pred_check_branch
        %161 = sbr.rel (%p158) target = $region28
      $region27: #{tpu_custom_call.1} parent=5 // pred_region
        %s162 = ssub.s32 %s17, 1
        %s163 = sand.u32 %s30, 1
        %s164 = scalar_lea.sflag [#allocation4], %s163
        %s165 = sand.u32 %s30, 1
        %s166 = smul.addr %s165, 64
        %s167 = scalar_lea.vmem [#allocation3], %s166
        // Predicated region
        $region29: #{tpu_custom_call.1} parent=27 // pred_check
          %p168 = pneg %p43
        $region30: #{tpu_custom_call.1} parent=27 // pred_check_branch
          %170 = sbr.rel (%p168) target = $region32
        $region31: #{tpu_custom_call.1} parent=27 // pred_region
          %171 = dma.done %s164, 1024
        $region32: #{tpu_custom_call.1} parent=27 // pred_fallthru
          _
        %s172 = sand.u32 %s56, 1
        %s173 = scalar_lea.sflag [#allocation7], %s172
        %s174 = sand.u32 %s56, 1
        %s175 = smul.addr %s174, 16
        %s176 = scalar_lea.vmem [#allocation6], %s175
        // Predicated region
        $region33: #{tpu_custom_call.1} parent=27 // pred_check
          %p177 = pneg %p69
        $region34: #{tpu_custom_call.1} parent=27 // pred_check_branch
          %179 = sbr.rel (%p177) target = $region36
        $region35: #{tpu_custom_call.1} parent=27 // pred_region
          %180 = dma.done %s173, 256
        $region36: #{tpu_custom_call.1} parent=27 // pred_fallthru
          _
        %s181 = sand.u32 %s30, 1
        %s182 = scalar_lea.sflag [#allocation4], %s181
        %s183 = sand.u32 %s30, 1
        %s184 = smul.addr %s183, 64
        %s185 = scalar_lea.vmem [#allocation3], %s184
        %p186 = pneg %p43
        %p187 = pneg %p40
        %s188 = sand.u32 %s56, 1
        %s189 = scalar_lea.sflag [#allocation7], %s188
        %s190 = sand.u32 %s56, 1
        %s191 = smul.addr %s190, 16
        %s192 = scalar_lea.vmem [#allocation6], %s191
        %p193 = pneg %p69
        %p194 = pneg %p66
        %p195 = pneg %p95
        %p196 = pneg %p92
        %s197 = sand.u32 %s82, 1
        %s198 = scalar_lea.sflag [#allocation5], %s197
        %s199 = sand.u32 %s82, 1
        %s200 = smul.addr %s199, 16
        %s201 = scalar_lea.vmem [#allocation8], %s200
        %v202 = vlaneseq
        %v203 = vshrl.u32 %v202, 7
        %v204 = vadd.s32 %v203, 8
        %v205 = vlaneseq
        %v206 = vand.u32 %v205, 127
        %v207 = vand.u32 %v206, 15
        %v208 = vadd.s32 %v203, 4294967295
        %v209 = vadd.s32 %v204, 4294967295
        %vm210 = vcmp.ge.s32.totalorder %v208, 0
        %vm211 = vcmp.ge.s32.totalorder %v209, 0
        %vm212 = vcmp.lt.s32.totalorder %v208, 16
        %vm213 = vcmp.lt.s32.totalorder %v209, 16
        %vm214 = vmand %vm210, %vm212
        %vm215 = vmand %vm211, %vm213
        %vm216 = vcmp.ge.s32.totalorder %v203, 0
        %vm217 = vcmp.ge.s32.totalorder %v204, 0
        %vm218 = vcmp.lt.s32.totalorder %v203, 16
        %vm219 = vcmp.lt.s32.totalorder %v204, 16
        %vm220 = vmand %vm216, %vm218
        %vm221 = vmand %vm217, %vm219
        %v222 = vadd.s32 %v203, 1
        %v223 = vadd.s32 %v204, 1
        %vm224 = vcmp.ge.s32.totalorder %v222, 0
        %vm225 = vcmp.ge.s32.totalorder %v223, 0
        %vm226 = vcmp.lt.s32.totalorder %v222, 16
        %vm227 = vcmp.lt.s32.totalorder %v223, 16
        %vm228 = vmand %vm224, %vm226
        %vm229 = vmand %vm225, %vm227
        %v230 = vadd.s32 %v207, 4294967295
        %vm231 = vcmp.ge.s32.totalorder %v230, 0
        %vm232 = vcmp.lt.s32.totalorder %v230, 16
        %vm233 = vmand %vm231, %vm232
        %vm234 = vcmp.ge.s32.totalorder %v207, 0
        %vm235 = vcmp.lt.s32.totalorder %v207, 16
        %vm236 = vmand %vm234, %vm235
        %v237 = vadd.s32 %v207, 1
        %vm238 = vcmp.ge.s32.totalorder %v237, 0
        %vm239 = vcmp.lt.s32.totalorder %v237, 16
        %vm240 = vmand %vm238, %vm239
        %v241 = vld [vmem:[%s167] sm:$0xff]
        %v242 = vld [vmem:[%s167 + $0x8] sm:$0xff]
        %s243 = scalar_lea.vmem %s167, 16 [#allocation3]
        %v244 = vld [vmem:[%s243] sm:$0xff]
        %v245 = vld [vmem:[%s243 + $0x8] sm:$0xff]
        %s246 = scalar_lea.vmem %s167, 32 [#allocation3]
        %v247 = vld [vmem:[%s246] sm:$0xff]
        %v248 = vld [vmem:[%s246 + $0x8] sm:$0xff]
        %s249 = scalar_lea.vmem %s167, 48 [#allocation3]
        %v250 = vld [vmem:[%s249] sm:$0xff]
        %v251 = vld [vmem:[%s249 + $0x8] sm:$0xff]
        %252 = vrot.lane.b32.xlu0 %v241, 127
        %v253 = vpop.permute.xlu0 %252
        %254 = vrot.lane.b32.xlu0 %v242, 127
        %v255 = vpop.permute.xlu0 %254
        %v256 = vsub.f32 %v253, %v241
        %v257 = vsub.f32 %v255, %v242
        %v258 = vmul.f32 %v256, %v256
        %v259 = vmul.f32 %v257, %v257
        %v260 = vadd.f32 %v258, 0.0
        %v261 = vadd.f32 %v259, 0.0
        %262 = vrot.lane.b32.xlu0 %v244, 127
        %v263 = vpop.permute.xlu0 %262
        %264 = vrot.lane.b32.xlu0 %v245, 127
        %v265 = vpop.permute.xlu0 %264
        %v266 = vsub.f32 %v263, %v244
        %v267 = vsub.f32 %v265, %v245
        %v268 = vmul.f32 %v266, %v266
        %v269 = vmul.f32 %v267, %v267
        %v270 = vadd.f32 %v260, %v268
        %v271 = vadd.f32 %v261, %v269
        %272 = vrot.lane.b32.xlu0 %v247, 127
        %v273 = vpop.permute.xlu0 %272
        %274 = vrot.lane.b32.xlu0 %v248, 127
        %v275 = vpop.permute.xlu0 %274
        %v276 = vsub.f32 %v273, %v247
        %v277 = vsub.f32 %v275, %v248
        %v278 = vmul.f32 %v276, %v276
        %v279 = vmul.f32 %v277, %v277
        %v280 = vadd.f32 %v270, %v278
        %v281 = vadd.f32 %v271, %v279
        %282 = vrot.lane.b32.xlu0 %v250, 127
        %v283 = vpop.permute.xlu0 %282
        %284 = vrot.lane.b32.xlu0 %v251, 127
        %v285 = vpop.permute.xlu0 %284
        %v286 = vsub.f32 %v283, %v250
        %v287 = vsub.f32 %v285, %v251
        %v288 = vmul.f32 %v286, %v286
        %v289 = vmul.f32 %v287, %v287
        %v290 = vadd.f32 %v280, %v288
        %v291 = vadd.f32 %v281, %v289
        %v292 = vsub.f32 0.0, %v290
        %v293 = vsub.f32 0.0, %v291
        %v294 = vmul.f32 %v292, 0.125
        %v295 = vmul.f32 %v293, 0.125
        %v296 = vmul.f32 %v294, 1.442695
        %v297 = vpow.pop %v296
        %v298 = vmul.f32 %v295, 1.442695
        %v299 = vpow.pop %v298
        %vm300 = vmand %vm220, %vm240
        %vm301 = vmand %vm221, %vm240
        %v302 = vsel %vm300, %v297, 0.0
        %v303 = vsel %vm301, %v299, 0.0
        %s304 = scalar_lea.vmem [#allocation2], 64
        %305 = vst [vmem:[%s304] sm:$0xff] %v302
        %306 = vst [vmem:[%s304 + $0x8] sm:$0xff] %v303
        %307 = vrot.lane.b32.xlu0 %v297, 1
        %v308 = vpop.permute.xlu0 %307
        %309 = vrot.lane.b32.xlu0 %v299, 1
        %v310 = vpop.permute.xlu0 %309
        %vm311 = vmand %vm220, %vm233
        %vm312 = vmand %vm221, %vm233
        %v313 = vsel %vm311, %v308, 0.0
        %v314 = vsel %vm312, %v310, 0.0
        %s315 = scalar_lea.vmem [#allocation2], 48
        %316 = vst [vmem:[%s315] sm:$0xff] %v313
        %317 = vst [vmem:[%s315 + $0x8] sm:$0xff] %v314
        %v318 = vrot.slane %v241, 1
        %v319 = vrot.slane %v242, 1
        %vm320 = vcmp.lt.s32.totalorder %v203, 7
        %v321 = vsel %vm320, %v318, %v319
        %v322 = vsel %vm320, %v319, %v318
        %v323 = vrot.slane %v244, 1
        %v324 = vrot.slane %v245, 1
        %v325 = vsel %vm320, %v323, %v324
        %v326 = vsel %vm320, %v324, %v323
        %v327 = vrot.slane %v247, 1
        %v328 = vrot.slane %v248, 1
        %v329 = vsel %vm320, %v327, %v328
        %v330 = vsel %vm320, %v328, %v327
        %v331 = vrot.slane %v250, 1
        %v332 = vrot.slane %v251, 1
        %v333 = vsel %vm320, %v331, %v332
        %v334 = vsel %vm320, %v332, %v331
        %335 = vrot.lane.b32.xlu0 %v321, 1
        %v336 = vpop.permute.xlu0 %335
        %337 = vrot.lane.b32.xlu0 %v322, 1
        %v338 = vpop.permute.xlu0 %337
        %v339 = vsub.f32 %v336, %v241
        %v340 = vsub.f32 %v338, %v242
        %v341 = vmul.f32 %v339, %v339
        %v342 = vmul.f32 %v340, %v340
        %v343 = vadd.f32 %v341, 0.0
        %v344 = vadd.f32 %v342, 0.0
        %345 = vrot.lane.b32.xlu0 %v325, 1
        %v346 = vpop.permute.xlu0 %345
        %347 = vrot.lane.b32.xlu0 %v326, 1
        %v348 = vpop.permute.xlu0 %347
        %v349 = vsub.f32 %v346, %v244
        %v350 = vsub.f32 %v348, %v245
        %v351 = vmul.f32 %v349, %v349
        %v352 = vmul.f32 %v350, %v350
        %v353 = vadd.f32 %v343, %v351
        %v354 = vadd.f32 %v344, %v352
        %355 = vrot.lane.b32.xlu0 %v329, 1
        %v356 = vpop.permute.xlu0 %355
        %357 = vrot.lane.b32.xlu0 %v330, 1
        %v358 = vpop.permute.xlu0 %357
        %v359 = vsub.f32 %v356, %v247
        %v360 = vsub.f32 %v358, %v248
        %v361 = vmul.f32 %v359, %v359
        %v362 = vmul.f32 %v360, %v360
        %v363 = vadd.f32 %v353, %v361
        %v364 = vadd.f32 %v354, %v362
        %365 = vrot.lane.b32.xlu0 %v333, 1
        %v366 = vpop.permute.xlu0 %365
        %367 = vrot.lane.b32.xlu0 %v334, 1
        %v368 = vpop.permute.xlu0 %367
        %v369 = vsub.f32 %v366, %v250
        %v370 = vsub.f32 %v368, %v251
        %v371 = vmul.f32 %v369, %v369
        %v372 = vmul.f32 %v370, %v370
        %v373 = vadd.f32 %v363, %v371
        %v374 = vadd.f32 %v364, %v372
        %v375 = vsub.f32 0.0, %v373
        %v376 = vsub.f32 0.0, %v374
        %v377 = vmul.f32 %v375, 0.125
        %v378 = vmul.f32 %v376, 0.125
        %v379 = vmul.f32 %v377, 1.442695
        %v380 = vpow.pop %v379
        %v381 = vmul.f32 %v378, 1.442695
        %v382 = vpow.pop %v381
        %vm383 = vmand %vm228, %vm233
        %vm384 = vmand %vm229, %vm233
        %v385 = vsel %vm383, %v380, 0.0
        %v386 = vsel %vm384, %v382, 0.0
        %s387 = scalar_lea.vmem [#allocation2], 80
        %388 = vst [vmem:[%s387] sm:$0xff] %v385
        %389 = vst [vmem:[%s387 + $0x8] sm:$0xff] %v386
        %v390 = vrot.slane %v380, 7
        %v391 = vrot.slane %v382, 7
        %vm392 = vcmp.lt.s32.totalorder %v203, 1
        %v393 = vsel %vm392, %v390, %v391
        %v394 = vsel %vm392, %v391, %v390
        %395 = vrot.lane.b32.xlu0 %v394, 127
        %v396 = vpop.permute.xlu0 %395
        %397 = vrot.lane.b32.xlu0 %v393, 127
        %v398 = vpop.permute.xlu0 %397
        %vm399 = vmand %vm214, %vm240
        %vm400 = vmand %vm215, %vm240
        %v401 = vsel %vm399, %v396, 0.0
        %v402 = vsel %vm400, %v398, 0.0
        %s403 = scalar_lea.vmem [#allocation2], 32
        %404 = vst [vmem:[%s403] sm:$0xff] %v401
        %405 = vst [vmem:[%s403 + $0x8] sm:$0xff] %v402
        %v406 = vsub.f32 %v321, %v241
        %v407 = vsub.f32 %v322, %v242
        %v408 = vmul.f32 %v406, %v406
        %v409 = vmul.f32 %v407, %v407
        %v410 = vadd.f32 %v408, 0.0
        %v411 = vadd.f32 %v409, 0.0
        %v412 = vsub.f32 %v325, %v244
        %v413 = vsub.f32 %v326, %v245
        %v414 = vmul.f32 %v412, %v412
        %v415 = vmul.f32 %v413, %v413
        %v416 = vadd.f32 %v410, %v414
        %v417 = vadd.f32 %v411, %v415
        %v418 = vsub.f32 %v329, %v247
        %v419 = vsub.f32 %v330, %v248
        %v420 = vmul.f32 %v418, %v418
        %v421 = vmul.f32 %v419, %v419
        %v422 = vadd.f32 %v416, %v420
        %v423 = vadd.f32 %v417, %v421
        %v424 = vsub.f32 %v333, %v250
        %v425 = vsub.f32 %v334, %v251
        %v426 = vmul.f32 %v424, %v424
        %v427 = vmul.f32 %v425, %v425
        %v428 = vadd.f32 %v422, %v426
        %v429 = vadd.f32 %v423, %v427
        %v430 = vsub.f32 0.0, %v428
        %v431 = vsub.f32 0.0, %v429
        %v432 = vmul.f32 %v430, 0.125
        %v433 = vmul.f32 %v431, 0.125
        %v434 = vmul.f32 %v432, 1.442695
        %v435 = vpow.pop %v434
        %v436 = vmul.f32 %v433, 1.442695
        %v437 = vpow.pop %v436
        %vm438 = vmand %vm228, %vm236
        %vm439 = vmand %vm229, %vm236
        %v440 = vsel %vm438, %v435, 0.0
        %v441 = vsel %vm439, %v437, 0.0
        %s442 = scalar_lea.vmem [#allocation2], 96
        %443 = vst [vmem:[%s442] sm:$0xff] %v440
        %444 = vst [vmem:[%s442 + $0x8] sm:$0xff] %v441
        %v445 = vrot.slane %v435, 7
        %v446 = vrot.slane %v437, 7
        %v447 = vsel %vm392, %v445, %v446
        %v448 = vsel %vm392, %v446, %v445
        %vm449 = vmand %vm214, %vm236
        %vm450 = vmand %vm215, %vm236
        %v451 = vsel %vm449, %v448, 0.0
        %v452 = vsel %vm450, %v447, 0.0
        %s453 = scalar_lea.vmem [#allocation2], 16
        %454 = vst [vmem:[%s453] sm:$0xff] %v451
        %455 = vst [vmem:[%s453 + $0x8] sm:$0xff] %v452
        %456 = vrot.lane.b32.xlu0 %v321, 127
        %v457 = vpop.permute.xlu0 %456
        %458 = vrot.lane.b32.xlu0 %v322, 127
        %v459 = vpop.permute.xlu0 %458
        %v460 = vsub.f32 %v457, %v241
        %v461 = vsub.f32 %v459, %v242
        %v462 = vmul.f32 %v460, %v460
        %v463 = vmul.f32 %v461, %v461
        %v464 = vadd.f32 %v462, 0.0
        %v465 = vadd.f32 %v463, 0.0
        %466 = vrot.lane.b32.xlu0 %v325, 127
        %v467 = vpop.permute.xlu0 %466
        %468 = vrot.lane.b32.xlu0 %v326, 127
        %v469 = vpop.permute.xlu0 %468
        %v470 = vsub.f32 %v467, %v244
        %v471 = vsub.f32 %v469, %v245
        %v472 = vmul.f32 %v470, %v470
        %v473 = vmul.f32 %v471, %v471
        %v474 = vadd.f32 %v464, %v472
        %v475 = vadd.f32 %v465, %v473
        %476 = vrot.lane.b32.xlu0 %v329, 127
        %v477 = vpop.permute.xlu0 %476
        %478 = vrot.lane.b32.xlu0 %v330, 127
        %v479 = vpop.permute.xlu0 %478
        %v480 = vsub.f32 %v477, %v247
        %v481 = vsub.f32 %v479, %v248
        %v482 = vmul.f32 %v480, %v480
        %v483 = vmul.f32 %v481, %v481
        %v484 = vadd.f32 %v474, %v482
        %v485 = vadd.f32 %v475, %v483
        %486 = vrot.lane.b32.xlu0 %v333, 127
        %v487 = vpop.permute.xlu0 %486
        %488 = vrot.lane.b32.xlu0 %v334, 127
        %v489 = vpop.permute.xlu0 %488
        %v490 = vsub.f32 %v487, %v250
        %v491 = vsub.f32 %v489, %v251
        %v492 = vmul.f32 %v490, %v490
        %v493 = vmul.f32 %v491, %v491
        %v494 = vadd.f32 %v484, %v492
        %v495 = vadd.f32 %v485, %v493
        %v496 = vsub.f32 0.0, %v494
        %v497 = vsub.f32 0.0, %v495
        %v498 = vmul.f32 %v496, 0.125
        %v499 = vmul.f32 %v497, 0.125
        %v500 = vmul.f32 %v498, 1.442695
        %v501 = vpow.pop %v500
        %v502 = vmul.f32 %v499, 1.442695
        %v503 = vpow.pop %v502
        %vm504 = vmand %vm228, %vm240
        %vm505 = vmand %vm229, %vm240
        %v506 = vsel %vm504, %v501, 0.0
        %v507 = vsel %vm505, %v503, 0.0
        %s508 = scalar_lea.vmem [#allocation2], 112
        %509 = vst [vmem:[%s508] sm:$0xff] %v506
        %510 = vst [vmem:[%s508 + $0x8] sm:$0xff] %v507
        %v511 = vrot.slane %v501, 7
        %v512 = vrot.slane %v503, 7
        %v513 = vsel %vm392, %v511, %v512
        %v514 = vsel %vm392, %v512, %v511
        %515 = vrot.lane.b32.xlu0 %v514, 1
        %v516 = vpop.permute.xlu0 %515
        %517 = vrot.lane.b32.xlu0 %v513, 1
        %v518 = vpop.permute.xlu0 %517
        %vm519 = vmand %vm214, %vm233
        %vm520 = vmand %vm215, %vm233
        %v521 = vsel %vm519, %v516, 0.0
        %v522 = vsel %vm520, %v518, 0.0
        %523 = vst [vmem:[#allocation2] sm:$0xff] %v521
        %524 = vst [vmem:[#allocation2 + $0x8] sm:$0xff] %v522
        %v525 = vld [vmem:[%s176] sm:$0xff]
        %v526 = vld [vmem:[%s176 + $0x8] sm:$0xff]
        %v527 = vmax.f32 %v525, 0.1
        %v528 = vmax.f32 %v526, 0.1
        %v529 = vmin.f32 %v527, 0.9
        %v530 = vmin.f32 %v528, 0.9
        %v531 = vlog2.pop %v529
        %v532 = vmul.f32 %v531, 0.6931472
        %v533 = vlog2.pop %v530
        %v534 = vmul.f32 %v533, 0.6931472
        %v535 = vsub.f32 1.0, %v529
        %v536 = vsub.f32 1.0, %v530
        %v537 = vlog2.pop %v535
        %v538 = vmul.f32 %v537, 0.6931472
        %v539 = vlog2.pop %v536
        %v540 = vmul.f32 %v539, 0.6931472
        %v541 = vsub.f32 %v532, %v538
        %v542 = vsub.f32 %v534, %v540
        %v543 = vrot.slane %v541, 7
        %v544 = vrot.slane %v542, 7
        %v545 = vsel %vm392, %v543, %v544
        %v546 = vsel %vm392, %v544, %v543
        %547 = vrot.lane.b32.xlu0 %v546, 1
        %v548 = vpop.permute.xlu0 %547
        %549 = vrot.lane.b32.xlu0 %v545, 1
        %v550 = vpop.permute.xlu0 %549
        %v551 = vld [vmem:[#allocation2] sm:$0xff]
        %v552 = vld [vmem:[#allocation2 + $0x8] sm:$0xff]
        %v553 = vmul.f32 %v551, %v548
        %v554 = vmul.f32 %v552, %v550
        %v555 = vadd.f32 %v541, %v553
        %v556 = vadd.f32 %v542, %v554
        %v557 = vld [vmem:[%s453] sm:$0xff]
        %v558 = vld [vmem:[%s453 + $0x8] sm:$0xff]
        %v559 = vmul.f32 %v557, %v546
        %v560 = vmul.f32 %v558, %v545
        %v561 = vadd.f32 %v555, %v559
        %v562 = vadd.f32 %v556, %v560
        %563 = vrot.lane.b32.xlu0 %v546, 127
        %v564 = vpop.permute.xlu0 %563
        %565 = vrot.lane.b32.xlu0 %v545, 127
        %v566 = vpop.permute.xlu0 %565
        %v567 = vld [vmem:[%s403] sm:$0xff]
        %v568 = vld [vmem:[%s403 + $0x8] sm:$0xff]
        %v569 = vmul.f32 %v567, %v564
        %v570 = vmul.f32 %v568, %v566
        %v571 = vadd.f32 %v561, %v569
        %v572 = vadd.f32 %v562, %v570
        %573 = vrot.lane.b32.xlu0 %v541, 1
        %v574 = vpop.permute.xlu0 %573
        %575 = vrot.lane.b32.xlu0 %v542, 1
        %v576 = vpop.permute.xlu0 %575
        %v577 = vld [vmem:[%s315] sm:$0xff]
        %v578 = vld [vmem:[%s315 + $0x8] sm:$0xff]
        %v579 = vmul.f32 %v577, %v574
        %v580 = vmul.f32 %v578, %v576
        %v581 = vadd.f32 %v571, %v579
        %v582 = vadd.f32 %v572, %v580
        %583 = vrot.lane.b32.xlu0 %v541, 127
        %v584 = vpop.permute.xlu0 %583
        %585 = vrot.lane.b32.xlu0 %v542, 127
        %v586 = vpop.permute.xlu0 %585
        %v587 = vld [vmem:[%s304] sm:$0xff]
        %v588 = vld [vmem:[%s304 + $0x8] sm:$0xff]
        %v589 = vmul.f32 %v587, %v584
        %v590 = vmul.f32 %v588, %v586
        %v591 = vadd.f32 %v581, %v589
        %v592 = vadd.f32 %v582, %v590
        %v593 = vrot.slane %v541, 1
        %v594 = vrot.slane %v542, 1
        %v595 = vsel %vm320, %v593, %v594
        %v596 = vsel %vm320, %v594, %v593
        %597 = vrot.lane.b32.xlu0 %v595, 1
        %v598 = vpop.permute.xlu0 %597
        %599 = vrot.lane.b32.xlu0 %v596, 1
        %v600 = vpop.permute.xlu0 %599
        %v601 = vld [vmem:[%s387] sm:$0xff]
        %v602 = vld [vmem:[%s387 + $0x8] sm:$0xff]
        %v603 = vmul.f32 %v601, %v598
        %v604 = vmul.f32 %v602, %v600
        %v605 = vadd.f32 %v591, %v603
        %v606 = vadd.f32 %v592, %v604
        %v607 = vld [vmem:[%s442] sm:$0xff]
        %v608 = vld [vmem:[%s442 + $0x8] sm:$0xff]
        %v609 = vmul.f32 %v607, %v595
        %v610 = vmul.f32 %v608, %v596
        %v611 = vadd.f32 %v605, %v609
        %v612 = vadd.f32 %v606, %v610
        %613 = vrot.lane.b32.xlu0 %v595, 127
        %v614 = vpop.permute.xlu0 %613
        %615 = vrot.lane.b32.xlu0 %v596, 127
        %v616 = vpop.permute.xlu0 %615
        %v617 = vld [vmem:[%s508] sm:$0xff]
        %v618 = vld [vmem:[%s508 + $0x8] sm:$0xff]
        %v619 = vmul.f32 %v617, %v614
        %v620 = vmul.f32 %v618, %v616
        %v621 = vadd.f32 %v611, %v619
        %v622 = vadd.f32 %v612, %v620
        %v623 = vmax.f32 %v621, -2.1972246
        %v624 = vmax.f32 %v622, -2.1972246
        %v625 = vmin.f32 %v623, 2.1972246
        %v626 = vmin.f32 %v624, 2.1972246
        %v627 = vrot.slane %v625, 7
        %v628 = vrot.slane %v626, 7
        %v629 = vsel %vm392, %v627, %v628
        %v630 = vsel %vm392, %v628, %v627
        %631 = vrot.lane.b32.xlu0 %v630, 1
        %v632 = vpop.permute.xlu0 %631
        %633 = vrot.lane.b32.xlu0 %v629, 1
        %v634 = vpop.permute.xlu0 %633
        %v635 = vmul.f32 %v551, %v632
        %v636 = vmul.f32 %v552, %v634
        %v637 = vadd.f32 %v625, %v635
        %v638 = vadd.f32 %v626, %v636
        %v639 = vmul.f32 %v557, %v630
        %v640 = vmul.f32 %v558, %v629
        %v641 = vadd.f32 %v637, %v639
        %v642 = vadd.f32 %v638, %v640
        %643 = vrot.lane.b32.xlu0 %v630, 127
        %v644 = vpop.permute.xlu0 %643
        %645 = vrot.lane.b32.xlu0 %v629, 127
        %v646 = vpop.permute.xlu0 %645
        %v647 = vmul.f32 %v567, %v644
        %v648 = vmul.f32 %v568, %v646
        %v649 = vadd.f32 %v641, %v647
        %v650 = vadd.f32 %v642, %v648
        %651 = vrot.lane.b32.xlu0 %v625, 1
        %v652 = vpop.permute.xlu0 %651
        %653 = vrot.lane.b32.xlu0 %v626, 1
        %v654 = vpop.permute.xlu0 %653
        %v655 = vmul.f32 %v577, %v652
        %v656 = vmul.f32 %v578, %v654
        %v657 = vadd.f32 %v649, %v655
        %v658 = vadd.f32 %v650, %v656
        %659 = vrot.lane.b32.xlu0 %v625, 127
        %v660 = vpop.permute.xlu0 %659
        %661 = vrot.lane.b32.xlu0 %v626, 127
        %v662 = vpop.permute.xlu0 %661
        %v663 = vmul.f32 %v587, %v660
        %v664 = vmul.f32 %v588, %v662
        %v665 = vadd.f32 %v657, %v663
        %v666 = vadd.f32 %v658, %v664
        %v667 = vrot.slane %v625, 1
        %v668 = vrot.slane %v626, 1
        %v669 = vsel %vm320, %v667, %v668
        %v670 = vsel %vm320, %v668, %v667
        %671 = vrot.lane.b32.xlu0 %v669, 1
        %v672 = vpop.permute.xlu0 %671
        %673 = vrot.lane.b32.xlu0 %v670, 1
        %v674 = vpop.permute.xlu0 %673
        %v675 = vmul.f32 %v601, %v672
        %v676 = vmul.f32 %v602, %v674
        %v677 = vadd.f32 %v665, %v675
        %v678 = vadd.f32 %v666, %v676
        %v679 = vmul.f32 %v607, %v669
        %v680 = vmul.f32 %v608, %v670
        %v681 = vadd.f32 %v677, %v679
        %v682 = vadd.f32 %v678, %v680
        %683 = vrot.lane.b32.xlu0 %v669, 127
        %v684 = vpop.permute.xlu0 %683
        %685 = vrot.lane.b32.xlu0 %v670, 127
        %v686 = vpop.permute.xlu0 %685
        %v687 = vmul.f32 %v617, %v684
        %v688 = vmul.f32 %v618, %v686
        %v689 = vadd.f32 %v681, %v687
        %v690 = vadd.f32 %v682, %v688
        %v691 = vmax.f32 %v689, -2.1972246
        %v692 = vmax.f32 %v690, -2.1972246
        %v693 = vmin.f32 %v691, 2.1972246
        %v694 = vmin.f32 %v692, 2.1972246
        %v695 = vrot.slane %v693, 7
        %v696 = vrot.slane %v694, 7
        %v697 = vsel %vm392, %v695, %v696
        %v698 = vsel %vm392, %v696, %v695
        %699 = vrot.lane.b32.xlu0 %v698, 1
        %v700 = vpop.permute.xlu0 %699
        %701 = vrot.lane.b32.xlu0 %v697, 1
        %v702 = vpop.permute.xlu0 %701
        %v703 = vmul.f32 %v551, %v700
        %v704 = vmul.f32 %v552, %v702
        %v705 = vadd.f32 %v693, %v703
        %v706 = vadd.f32 %v694, %v704
        %v707 = vmul.f32 %v557, %v698
        %v708 = vmul.f32 %v558, %v697
        %v709 = vadd.f32 %v705, %v707
        %v710 = vadd.f32 %v706, %v708
        %711 = vrot.lane.b32.xlu0 %v698, 127
        %v712 = vpop.permute.xlu0 %711
        %713 = vrot.lane.b32.xlu0 %v697, 127
        %v714 = vpop.permute.xlu0 %713
        %v715 = vmul.f32 %v567, %v712
        %v716 = vmul.f32 %v568, %v714
        %v717 = vadd.f32 %v709, %v715
        %v718 = vadd.f32 %v710, %v716
        %719 = vrot.lane.b32.xlu0 %v693, 1
        %v720 = vpop.permute.xlu0 %719
        %721 = vrot.lane.b32.xlu0 %v694, 1
        %v722 = vpop.permute.xlu0 %721
        %v723 = vmul.f32 %v577, %v720
        %v724 = vmul.f32 %v578, %v722
        %v725 = vadd.f32 %v717, %v723
        %v726 = vadd.f32 %v718, %v724
        %727 = vrot.lane.b32.xlu0 %v693, 127
        %v728 = vpop.permute.xlu0 %727
        %729 = vrot.lane.b32.xlu0 %v694, 127
        %v730 = vpop.permute.xlu0 %729
        %v731 = vmul.f32 %v587, %v728
        %v732 = vmul.f32 %v588, %v730
        %v733 = vadd.f32 %v725, %v731
        %v734 = vadd.f32 %v726, %v732
        %v735 = vrot.slane %v693, 1
        %v736 = vrot.slane %v694, 1
        %v737 = vsel %vm320, %v735, %v736
        %v738 = vsel %vm320, %v736, %v735
        %739 = vrot.lane.b32.xlu0 %v737, 1
        %v740 = vpop.permute.xlu0 %739
        %741 = vrot.lane.b32.xlu0 %v738, 1
        %v742 = vpop.permute.xlu0 %741
        %v743 = vmul.f32 %v601, %v740
        %v744 = vmul.f32 %v602, %v742
        %v745 = vadd.f32 %v733, %v743
        %v746 = vadd.f32 %v734, %v744
        %v747 = vmul.f32 %v607, %v737
        %v748 = vmul.f32 %v608, %v738
        %v749 = vadd.f32 %v745, %v747
        %v750 = vadd.f32 %v746, %v748
        %751 = vrot.lane.b32.xlu0 %v737, 127
        %v752 = vpop.permute.xlu0 %751
        %753 = vrot.lane.b32.xlu0 %v738, 127
        %v754 = vpop.permute.xlu0 %753
        %v755 = vmul.f32 %v617, %v752
        %v756 = vmul.f32 %v618, %v754
        %v757 = vadd.f32 %v749, %v755
        %v758 = vadd.f32 %v750, %v756
        %v759 = vmax.f32 %v757, -2.1972246
        %v760 = vmax.f32 %v758, -2.1972246
        %v761 = vmin.f32 %v759, 2.1972246
        %v762 = vmin.f32 %v760, 2.1972246
        %v763 = vrot.slane %v761, 7
        %v764 = vrot.slane %v762, 7
        %v765 = vsel %vm392, %v763, %v764
        %v766 = vsel %vm392, %v764, %v763
        %767 = vrot.lane.b32.xlu0 %v766, 1
        %v768 = vpop.permute.xlu0 %767
        %769 = vrot.lane.b32.xlu0 %v765, 1
        %v770 = vpop.permute.xlu0 %769
        %v771 = vmul.f32 %v551, %v768
        %v772 = vmul.f32 %v552, %v770
        %v773 = vadd.f32 %v761, %v771
        %v774 = vadd.f32 %v762, %v772
        %v775 = vmul.f32 %v557, %v766
        %v776 = vmul.f32 %v558, %v765
        %v777 = vadd.f32 %v773, %v775
        %v778 = vadd.f32 %v774, %v776
        %779 = vrot.lane.b32.xlu0 %v766, 127
        %v780 = vpop.permute.xlu0 %779
        %781 = vrot.lane.b32.xlu0 %v765, 127
        %v782 = vpop.permute.xlu0 %781
        %v783 = vmul.f32 %v567, %v780
        %v784 = vmul.f32 %v568, %v782
        %v785 = vadd.f32 %v777, %v783
        %v786 = vadd.f32 %v778, %v784
        %787 = vrot.lane.b32.xlu0 %v761, 1
        %v788 = vpop.permute.xlu0 %787
        %789 = vrot.lane.b32.xlu0 %v762, 1
        %v790 = vpop.permute.xlu0 %789
        %v791 = vmul.f32 %v577, %v788
        %v792 = vmul.f32 %v578, %v790
        %v793 = vadd.f32 %v785, %v791
        %v794 = vadd.f32 %v786, %v792
        %795 = vrot.lane.b32.xlu0 %v761, 127
        %v796 = vpop.permute.xlu0 %795
        %797 = vrot.lane.b32.xlu0 %v762, 127
        %v798 = vpop.permute.xlu0 %797
        %v799 = vmul.f32 %v587, %v796
        %v800 = vmul.f32 %v588, %v798
        %v801 = vadd.f32 %v793, %v799
        %v802 = vadd.f32 %v794, %v800
        %v803 = vrot.slane %v761, 1
        %v804 = vrot.slane %v762, 1
        %v805 = vsel %vm320, %v803, %v804
        %v806 = vsel %vm320, %v804, %v803
        %807 = vrot.lane.b32.xlu0 %v805, 1
        %v808 = vpop.permute.xlu0 %807
        %809 = vrot.lane.b32.xlu0 %v806, 1
        %v810 = vpop.permute.xlu0 %809
        %v811 = vmul.f32 %v601, %v808
        %v812 = vmul.f32 %v602, %v810
        %v813 = vadd.f32 %v801, %v811
        %v814 = vadd.f32 %v802, %v812
        %v815 = vmul.f32 %v607, %v805
        %v816 = vmul.f32 %v608, %v806
        %v817 = vadd.f32 %v813, %v815
        %v818 = vadd.f32 %v814, %v816
        %819 = vrot.lane.b32.xlu0 %v805, 127
        %v820 = vpop.permute.xlu0 %819
        %821 = vrot.lane.b32.xlu0 %v806, 127
        %v822 = vpop.permute.xlu0 %821
        %v823 = vmul.f32 %v617, %v820
        %v824 = vmul.f32 %v618, %v822
        %v825 = vadd.f32 %v817, %v823
        %v826 = vadd.f32 %v818, %v824
        %v827 = vmax.f32 %v825, -2.1972246
        %v828 = vmax.f32 %v826, -2.1972246
        %v829 = vmin.f32 %v827, 2.1972246
        %v830 = vmin.f32 %v828, 2.1972246
        %v831 = vrot.slane %v829, 7
        %v832 = vrot.slane %v830, 7
        %v833 = vsel %vm392, %v831, %v832
        %v834 = vsel %vm392, %v832, %v831
        %835 = vrot.lane.b32.xlu0 %v834, 1
        %v836 = vpop.permute.xlu0 %835
        %837 = vrot.lane.b32.xlu0 %v833, 1
        %v838 = vpop.permute.xlu0 %837
        %v839 = vmul.f32 %v551, %v836
        %v840 = vmul.f32 %v552, %v838
        %v841 = vadd.f32 %v829, %v839
        %v842 = vadd.f32 %v830, %v840
        %v843 = vmul.f32 %v557, %v834
        %v844 = vmul.f32 %v558, %v833
        %v845 = vadd.f32 %v841, %v843
        %v846 = vadd.f32 %v842, %v844
        %847 = vrot.lane.b32.xlu0 %v834, 127
        %v848 = vpop.permute.xlu0 %847
        %849 = vrot.lane.b32.xlu0 %v833, 127
        %v850 = vpop.permute.xlu0 %849
        %v851 = vmul.f32 %v567, %v848
        %v852 = vmul.f32 %v568, %v850
        %v853 = vadd.f32 %v845, %v851
        %v854 = vadd.f32 %v846, %v852
        %855 = vrot.lane.b32.xlu0 %v829, 1
        %v856 = vpop.permute.xlu0 %855
        %857 = vrot.lane.b32.xlu0 %v830, 1
        %v858 = vpop.permute.xlu0 %857
        %v859 = vmul.f32 %v577, %v856
        %v860 = vmul.f32 %v578, %v858
        %v861 = vadd.f32 %v853, %v859
        %v862 = vadd.f32 %v854, %v860
        %863 = vrot.lane.b32.xlu0 %v829, 127
        %v864 = vpop.permute.xlu0 %863
        %865 = vrot.lane.b32.xlu0 %v830, 127
        %v866 = vpop.permute.xlu0 %865
        %v867 = vmul.f32 %v587, %v864
        %v868 = vmul.f32 %v588, %v866
        %v869 = vadd.f32 %v861, %v867
        %v870 = vadd.f32 %v862, %v868
        %v871 = vrot.slane %v829, 1
        %v872 = vrot.slane %v830, 1
        %v873 = vsel %vm320, %v871, %v872
        %v874 = vsel %vm320, %v872, %v871
        %875 = vrot.lane.b32.xlu0 %v873, 1
        %v876 = vpop.permute.xlu0 %875
        %877 = vrot.lane.b32.xlu0 %v874, 1
        %v878 = vpop.permute.xlu0 %877
        %v879 = vmul.f32 %v601, %v876
        %v880 = vmul.f32 %v602, %v878
        %v881 = vadd.f32 %v869, %v879
        %v882 = vadd.f32 %v870, %v880
        %v883 = vmul.f32 %v607, %v873
        %v884 = vmul.f32 %v608, %v874
        %v885 = vadd.f32 %v881, %v883
        %v886 = vadd.f32 %v882, %v884
        %887 = vrot.lane.b32.xlu0 %v873, 127
        %v888 = vpop.permute.xlu0 %887
        %889 = vrot.lane.b32.xlu0 %v874, 127
        %v890 = vpop.permute.xlu0 %889
        %v891 = vmul.f32 %v617, %v888
        %v892 = vmul.f32 %v618, %v890
        %v893 = vadd.f32 %v885, %v891
        %v894 = vadd.f32 %v886, %v892
        %v895 = vmax.f32 %v893, -2.1972246
        %v896 = vmax.f32 %v894, -2.1972246
        %v897 = vmin.f32 %v895, 2.1972246
        %v898 = vmin.f32 %v896, 2.1972246
        %vm899 = vcmp.gt.f32.partialorder %v897, 0.0
        %vm900 = vcmp.gt.f32.partialorder %v898, 0.0
        %v901 = vsel %vm899, 1, 0
        %v902 = vsel %vm900, 1, 0
        %v903 = vcvt.s32.f32 %v901
        %v904 = vcvt.s32.f32 %v902
        %905 = vst [vmem:[%s201] sm:$0xff] %v903
        %906 = vst [vmem:[%s201 + $0x8] sm:$0xff] %v904
        %s907 = sand.u32 %s82, 1
        %s908 = scalar_lea.sflag [#allocation5], %s907
        %s909 = sand.u32 %s82, 1
        %s910 = smul.addr %s909, 16
        %s911 = scalar_lea.vmem [#allocation8], %s910
        // Predicated region
        $region37: #{tpu_custom_call.1} parent=27 // pred_check
          %p912 = pneg %p92
        $region38: #{tpu_custom_call.1} parent=27 // pred_check_branch
          %914 = sbr.rel (%p912) target = $region40
        $region39: #{tpu_custom_call.1} parent=27 // pred_region
          %s916 = ssub.s32 256, 256
          %917 = vsyncadd %s908, %s916
          %s918 = smul.addr %s22, 2
          %s919 = smul.addr %s918, 128
          %s920 = scalar_lea.hbm %s2, %s919
          %s921 = sshll.u32 %s911, 4
          %s922 = int_to_ptr.vmem [resolvable:$true] %s921
          %927 = dma.vmem_to_hbm [thread:$0]  %s922, 256, %s920, %s908, 128, 128, 8
        $region40: #{tpu_custom_call.1} parent=27 // pred_fallthru
          _
      $region28: #{tpu_custom_call.1} parent=5 // pred_fallthru
        _
      %p928 = scmp.le.s32.totalorder 2, %s17
      // Predicated region
      $region41: #{tpu_custom_call.1} parent=5 // pred_check
        %p929 = pneg %p928
      $region42: #{tpu_custom_call.1} parent=5 // pred_check_branch
        %931 = sbr.rel (%p929) target = $region44
      $region43: #{tpu_custom_call.1} parent=5 // pred_region
        %s932 = ssub.s32 %s17, 2
        // Predicated region
        $region45: #{tpu_custom_call.1} parent=43 // pred_check
          %p933 = pneg %p98
        $region46: #{tpu_custom_call.1} parent=43 // pred_check_branch
          %935 = sbr.rel (%p933) target = $region48
        $region47: #{tpu_custom_call.1} parent=43 // pred_region
          %s936 = sand.u32 %s83, 1
          %s937 = scalar_lea.sflag [#allocation5], %s936
          %s938 = sand.u32 %s83, 1
          %s939 = smul.addr %s938, 16
          %s940 = scalar_lea.vmem [#allocation8], %s939
          %941 = dma.done %s937, 256
        $region48: #{tpu_custom_call.1} parent=43 // pred_fallthru
          _
      $region44: #{tpu_custom_call.1} parent=5 // pred_fallthru
        _
    $region6: #{tpu_custom_call.1} parent=1 // loop_footer
      %s21 = sadd.s32 1, %s17
    $region7: #{tpu_custom_call.1} parent=1 // loop_footer_branch
      %16 = sbr.rel target = $region3
    $region8: #{tpu_custom_call.1} parent=1 // loop_exit
      _
    %942 = vsyncpa [#allocation4], 1
    %s943 = scalar_lea.sflag [#allocation4], 1
    %944 = vsyncpa %s943, 1
    %945 = vsyncpa [#allocation7], 1
    %s946 = scalar_lea.sflag [#allocation7], 1
    %947 = vsyncpa %s946, 1
    %948 = vsyncpa [#allocation5], 1
    %s949 = scalar_lea.sflag [#allocation5], 1
    %950 = vsyncpa %s949, 1

</llo_original>
